<compile_context>
chip_gen: v7x
topology: tpu7x:2x2x1
jax: 0.10.0
libtpu: 0.0.40
codegen_flags: <defaults>
</compile_context>

<pallas_src>
import jax
import jax.numpy as jnp
from jax.experimental import pallas as pl
from jax.experimental.pallas import tpu as pltpu


# ----------------------------------------------------------------------------
# Synthetic parameters (BatchNorm folded, eval mode)
# ----------------------------------------------------------------------------
def make_msfe_params(key, c_in, c_out, k_eca=5):
    """Raw per-conv taps/biases (BN folded) + the ECA 1-D channel kernel."""
    c_ = c_in // 4
    keys = iter(jax.random.split(key, 64))

    def conv_bn(k, cin, cout):
        # taps: (k, cin, cout); PyTorch W[co, ci, t] == w[t, ci, co]
        w = jax.random.normal(next(keys), (k, cin, cout), jnp.float32) / ((k * cin) ** 0.5)
        gamma = jax.random.uniform(next(keys), (cout,), jnp.float32, 0.5, 1.5)
        beta = jax.random.normal(next(keys), (cout,), jnp.float32) * 0.1
        mean = jax.random.normal(next(keys), (cout,), jnp.float32) * 0.1
        var = jax.random.uniform(next(keys), (cout,), jnp.float32, 0.5, 1.5)
        scale = gamma / jnp.sqrt(var + 1e-5)
        return w * scale[None, None, :], beta - mean * scale

    p = {"eca_w": jax.random.normal(next(keys), (k_eca,), jnp.float32) / (k_eca ** 0.5)}
    p["b1"] = conv_bn(1, c_in, c_)
    p["b3"] = [conv_bn(3, c_in, c_), conv_bn(3, c_, c_)]
    p["b4"] = [conv_bn(3, c_in, c_), conv_bn(3, c_, c_),
               conv_bn(3, c_, c_), conv_bn(3, c_, c_)]
    p["b5"] = [conv_bn(5, c_in, c_), conv_bn(5, c_, c_),
               conv_bn(5, c_, c_), conv_bn(5, c_, c_)]
    p["fin"] = conv_bn(1, 2 * c_in, c_out)
    return p


def pack_msfe_params(p, c_in, c_out, k_eca=5):
    """Pack raw params into MXU-friendly tensors (matmul weights pre-cast bf16)."""
    bf16 = jnp.bfloat16

    def pack_w(w, k_slots=None):
        # (k, cin, cout) -> (cout, k_slots*cin), taps centered in k_slots slots.
        k, cin, cout = w.shape
        k_slots = k if k_slots is None else k_slots
        off = (k_slots - k) // 2
        full = jnp.zeros((k_slots, cin, cout), jnp.float32).at[off:off + k].set(w)
        return jnp.transpose(full, (2, 0, 1)).reshape(cout, k_slots * cin)

    def pack_block_diag(convs, k_slots=5):
        # independent same-depth convs -> one block-diagonal (Cg, k_slots*Cg).
        cio = sum(w.shape[1] for w, _ in convs)
        full = jnp.zeros((k_slots, cio, cio), jnp.float32)
        r = 0
        for w, _ in convs:
            k, ci, co = w.shape
            off = (k_slots - k) // 2
            full = full.at[off:off + k, r:r + ci, r:r + co].set(w)
            r += ci
        wm = jnp.transpose(full, (2, 0, 1)).reshape(cio, k_slots * cio)
        bm = jnp.concatenate([b for _, b in convs])[:, None]
        return wm.astype(bf16), bm

    # ECA 1-D channel conv as a banded (C, C) matrix: att = sigmoid(band @ gap)
    pe = (k_eca - 1) // 2
    j = jnp.arange(c_in)[:, None]      # output channel
    i = jnp.arange(c_in)[None, :]      # input (pooled) channel
    t = i - j + pe
    band = jnp.where((t >= 0) & (t < k_eca), p["eca_w"][jnp.clip(t, 0, k_eca - 1)], 0.0)

    # fused stage 1 (vertical): first (k,1) convs of branches 3/4/5 + branch1 1x1
    w_s1 = jnp.concatenate([pack_w(p["b3"][0][0], 5), pack_w(p["b4"][0][0], 5),
                            pack_w(p["b5"][0][0], 5), pack_w(p["b1"][0], 5)], axis=0)
    b_s1 = jnp.concatenate([p["b3"][0][1], p["b4"][0][1],
                            p["b5"][0][1], p["b1"][1]])[:, None]

    # fused block-diagonal follow-up convs
    w_d1, b_d1 = pack_block_diag([p["b3"][1], p["b4"][1], p["b5"][1]])  # (1,3)(1,3)(1,5)
    w_d2, b_d2 = pack_block_diag([p["b4"][2], p["b5"][2]])              # (3,1)(5,1)
    w_d3, b_d3 = pack_block_diag([p["b4"][3], p["b5"][3]])              # (1,3)(1,5)

    w_fin = pack_w(p["fin"][0]).astype(bf16)   # (c_out, 2C)
    b_fin = p["fin"][1][:, None]
    return (band, w_s1.astype(bf16), b_s1, w_d1, b_d1,
            w_d2, b_d2, w_d3, b_d3, w_fin, b_fin)


# ----------------------------------------------------------------------------
# Plain-JAX reference (NCHW) for validation
# ----------------------------------------------------------------------------
def msfe_reference(x, p):
    B, C, H, W = x.shape
    hp = jax.lax.Precision.HIGHEST

    def silu(v):
        return v * (1.0 / (1.0 + jnp.exp(-v)))

    def conv(xin, wb, axis):
        w, b = wb
        k = w.shape[0]
        half = k // 2
        pad = [(0, 0)] * 4
        pad[axis] = (half, half)
        xp = jnp.pad(xin, pad)
        out = 0.0
        for t in range(k):
            sl = [slice(None)] * 4
            sl[axis] = slice(t, t + xin.shape[axis])
            out = out + jnp.einsum("bchw,co->bohw", xp[tuple(sl)], w[t], precision=hp)
        return silu(out + b[None, :, None, None])

    k_eca = p["eca_w"].shape[0]
    pe = (k_eca - 1) // 2
    pooled = jnp.mean(x, axis=(2, 3))
    pp = jnp.pad(pooled, ((0, 0), (pe, pe)))
    att = 0.0
    for t in range(k_eca):
        att = att + p["eca_w"][t] * pp[:, t:t + C]
    att = 1.0 / (1.0 + jnp.exp(-att))
    x1 = x * att[:, :, None, None]

    y1 = conv(x1, p["b1"], 2)
    xp2 = jnp.pad(x1, ((0, 0), (0, 0), (1, 1), (1, 1)))
    y2 = sum(xp2[:, :, i:i + H, j:j + W] for i in range(3) for j in range(3)) / 9.0
    y3 = conv(conv(x1, p["b3"][0], 2), p["b3"][1], 3)
    t4 = conv(conv(x1, p["b4"][0], 2), p["b4"][1], 3)
    y4 = conv(conv(t4, p["b4"][2], 2), p["b4"][3], 3)
    t5 = conv(conv(x1, p["b5"][0], 2), p["b5"][1], 3)
    y5 = conv(conv(t5, p["b5"][2], 2), p["b5"][3], 3)
    cat = jnp.concatenate([y1, y2, y3, y4, y5], axis=1)
    return x + conv(cat, p["fin"], 2)


# ----------------------------------------------------------------------------
# Pallas forward
# ----------------------------------------------------------------------------
def msfe_forward(x_nchw, packed, c_out):
    band, w_s1, b_s1, w_d1, b_d1, w_d2, b_d2, w_d3, b_d3, w_fin, b_fin = packed
    B, C, H, W = x_nchw.shape
    assert c_out == C, "MSFE residual add requires c_out == c_in"
    assert C % 4 == 0
    c_ = C // 4
    HW = H * W
    Npad = ((HW + 127) // 128) * 128         # == HW when already lane-aligned
    inv_hw = 1.0 / float(HW)
    f32, bf16 = jnp.float32, jnp.bfloat16

    # Free reshape of contiguous NCHW; pad lanes only if HW is not 128-aligned.
    xf = x_nchw.astype(f32).reshape(B, C, HW)
    if Npad != HW:
        xf = jnp.pad(xf, ((0, 0), (0, 0), (0, Npad - HW)))

    # Per-tap boundary masks, evaluated at the OUTPUT position n: row k is the
    # validity of reading n+d for the shift d it belongs to (zero-pad conv).
    idx = jnp.arange(Npad, dtype=jnp.int32)
    row, col = idx // W, idx % W
    inside = idx < HW

    def _m(c):
        return (c & inside).astype(f32)

    masks = jnp.stack([
        _m(inside),                                   # 0: interior (for GAP)
        _m(col >= 1), _m(col >= 2),                   # 1,2: horizontal d=-1,-2
        _m(col <= W - 2), _m(col <= W - 3),           # 3,4: horizontal d=+1,+2
        _m(row >= 1), _m(row >= 2),                   # 5,6: vertical   d=-1,-2
        _m(row <= H - 2), _m(row <= H - 3),           # 7,8: vertical   d=+1,+2
    ])
    H_MASK = {-1: 1, -2: 2, 1: 3, 2: 4}
    V_MASK = {-1: 5, -2: 6, 1: 7, 2: 8}

    def kernel(x_ref, band_ref, ws1_ref, bs1_ref, wd1_ref, bd1_ref,
               wd2_ref, bd2_ref, wd3_ref, bd3_ref, wfin_ref, bfin_ref,
               mask_ref, out_ref):
        x = x_ref[0]                          # (C, Npad) f32
        mk = mask_ref[...]                    # (9, Npad) f32

        def mrow(i):
            return mk[i:i + 1, :]

        def sigmoid(v):                       # EUP exp + EUP approx reciprocal
            return pl.reciprocal(1.0 + jnp.exp(-v), approx=True)

        def silu(v):
            return v * sigmoid(v)

        def shift(a, d):                      # out[:, n] = a[:, (n + d) % Npad]
            return pltpu.roll(a, (-d) % Npad, axis=1)

        def hsh(a, d):                        # within-row shift + zero-pad mask
            return shift(a, d) * mrow(H_MASK[d])

        def vsh(a, r):                        # across-row shift + zero-pad mask
            return shift(a, r * W) * mrow(V_MASK[r])

        def conv_mm(w_ref, b_ref, stacked):   # one bf16 MXU matmul (+bias+SiLU)
            return silu(jnp.dot(w_ref[...], stacked.astype(bf16),
                                preferred_element_type=f32) + b_ref[...])

        # --- ECA: lane-reduce GAP -> banded CxC matvec -> sigmoid gate -------
        xin = x if Npad == HW else x * mrow(0)
        pooled = jnp.sum(xin, axis=1, keepdims=True) * inv_hw          # (C, 1)
        pooled_b = jnp.broadcast_to(pooled, (C, 128))
        att = sigmoid(jnp.dot(band_ref[...], pooled_b,
                              preferred_element_type=f32)[:, 0:1])     # (C, 1)
        x1 = x * att

        # --- stage 1 (vertical): b3/b4/b5 first (k,1) convs + branch1 1x1 ----
        xv_m2, xv_m1 = vsh(x1, -2), vsh(x1, -1)
        xv_p1, xv_p2 = vsh(x1, 1), vsh(x1, 2)
        s1 = conv_mm(ws1_ref, bs1_ref,
                     jnp.concatenate([xv_m2, xv_m1, x1, xv_p1, xv_p2], axis=0))
        y1 = s1[3 * c_:4 * c_]

        # --- branch2: 3x3 avg-pool (separable; reuses the +-1-row shifts) ----
        colsum = x1 + xv_m1 + xv_p1
        y2 = (colsum + hsh(colsum, -1) + hsh(colsum, 1)) * (1.0 / 9.0)

        # --- depth 1 (horizontal): {b3.c2, b4.c2, b5.c2} block-diagonal ------
        cat1 = s1[0:3 * c_]                   # [m3; m4; m5]
        d1 = conv_mm(wd1_ref, bd1_ref,
                     jnp.concatenate([hsh(cat1, -2), hsh(cat1, -1), cat1,
                                      hsh(cat1, 1), hsh(cat1, 2)], axis=0))
        y3 = d1[0:c_]
        cat2 = d1[c_:3 * c_]                  # [t4; t5]

        # --- depth 2 (vertical): {b4.c3, b5.c3} block-diagonal ---------------
        d2 = conv_mm(wd2_ref, bd2_ref,
                     jnp.concatenate([vsh(cat2, -2), vsh(cat2, -1), cat2,
                                      vsh(cat2, 1), vsh(cat2, 2)], axis=0))

        # --- depth 3 (horizontal): {b4.c4, b5.c4} block-diagonal -------------
        d3 = conv_mm(wd3_ref, bd3_ref,
                     jnp.concatenate([hsh(d2, -2), hsh(d2, -1), d2,
                                      hsh(d2, 1), hsh(d2, 2)], axis=0))
        y4, y5 = d3[0:c_], d3[c_:2 * c_]

        # --- final 1x1 over [y1|y2|y3|y4|y5] + residual -----------------------
        ycat = jnp.concatenate([y1, y2, y3, y4, y5], axis=0)           # (2C, N)
        o = conv_mm(wfin_ref, bfin_ref, ycat)
        out_ref[0] = x + o

    aux = (band, w_s1, b_s1, w_d1, b_d1, w_d2, b_d2, w_d3, b_d3,
           w_fin, b_fin, masks)

    def const_spec(a):
        nd = a.ndim
        return pl.BlockSpec(a.shape, lambda i, _nd=nd: (0,) * _nd)

    in_specs = [pl.BlockSpec((1, C, Npad), lambda i: (i, 0, 0))]
    in_specs += [const_spec(a) for a in aux]

    # VMEM budget: double-buffered image in/out + params + live tap stacks,
    # 2x headroom, clamped to [16 MiB, 48 MiB] (fits v7x's 64 MiB physical).
    act = C * Npad * 4
    aux_bytes = sum(int(a.size) * a.dtype.itemsize for a in aux)
    stack_rows = 5 * C + 15 * c_ + 2 * 10 * c_
    est = 4 * act + 2 * aux_bytes + stack_rows * Npad * 6 + 16 * act
    vmem_limit = int(min(max(2 * est, 16 << 20), 48 << 20))

    out = pl.pallas_call(
        kernel,
        out_shape=jax.ShapeDtypeStruct((B, C, Npad), jnp.float32),
        grid=(B,),
        in_specs=in_specs,
        out_specs=pl.BlockSpec((1, C, Npad), lambda i: (i, 0, 0)),
        compiler_params=pltpu.CompilerParams(
            dimension_semantics=("parallel",),
            vmem_limit_bytes=vmem_limit),
    )(xf, *aux)

    if Npad != HW:
        out = out[:, :, :HW]
    return out.reshape(B, c_out, H, W)


if __name__ == "__main__":
    B, C, H, W = 2, 32, 16, 16
    c_out = C  # MSFE residual (x + conv(...)) requires c_out == c_in
    key = jax.random.PRNGKey(0)
    kx, kp = jax.random.split(key)
    x = jax.random.normal(kx, (B, C, H, W), jnp.float32)

    raw = make_msfe_params(kp, C, c_out)
    packed = pack_msfe_params(raw, C, c_out)

    fwd = jax.jit(msfe_forward, static_argnums=(2,))
    out = fwd(x, packed, c_out)
    jax.block_until_ready(out)
    assert out.shape == (B, c_out, H, W)
    assert bool(jnp.isfinite(out).all())

    ref = msfe_reference(x, raw)
    err = float(jnp.max(jnp.abs(out - ref)))
    assert bool(jnp.allclose(out, ref, rtol=5e-2, atol=5e-2)), (
        f"mismatch vs plain-JAX reference: max abs err {err}")
    print("KERNEL_OK")
</pallas_src>

<mosaic_0001>
module attributes {stable_mosaic.version = 11 : i64} {
  func.func @kernel(%arg0: i32, %arg1: memref<1x32x256xf32, #tpu.memory_space<vmem>>, %arg2: memref<32x32xf32, #tpu.memory_space<vmem>>, %arg3: memref<32x160xbf16, #tpu.memory_space<vmem>>, %arg4: memref<32x1xf32, #tpu.memory_space<vmem>>, %arg5: memref<24x120xbf16, #tpu.memory_space<vmem>>, %arg6: memref<24x1xf32, #tpu.memory_space<vmem>>, %arg7: memref<16x80xbf16, #tpu.memory_space<vmem>>, %arg8: memref<16x1xf32, #tpu.memory_space<vmem>>, %arg9: memref<16x80xbf16, #tpu.memory_space<vmem>>, %arg10: memref<16x1xf32, #tpu.memory_space<vmem>>, %arg11: memref<32x64xbf16, #tpu.memory_space<vmem>>, %arg12: memref<32x1xf32, #tpu.memory_space<vmem>>, %arg13: memref<9x256xf32, #tpu.memory_space<vmem>>, %arg14: memref<1x32x256xf32, #tpu.memory_space<vmem>>) attributes {dimension_semantics = [#tpu.dimension_semantics<parallel>], iteration_bounds = array<i64: 2>, scalar_prefetch = 0 : i64, scratch_operands = 0 : i64, tpu.core_type = #tpu.core_type<tc>, window_params = [{transform_indices = @transform_0, window_bounds = array<i64: 1, 32, 256>}, {pipeline_mode = #tpu.pipeline_mode<synchronous>, transform_indices = @transform_1, window_bounds = array<i64: 32, 32>}, {pipeline_mode = #tpu.pipeline_mode<synchronous>, transform_indices = @transform_2, window_bounds = array<i64: 32, 160>}, {pipeline_mode = #tpu.pipeline_mode<synchronous>, transform_indices = @transform_3, window_bounds = array<i64: 32, 1>}, {pipeline_mode = #tpu.pipeline_mode<synchronous>, transform_indices = @transform_4, window_bounds = array<i64: 24, 120>}, {pipeline_mode = #tpu.pipeline_mode<synchronous>, transform_indices = @transform_5, window_bounds = array<i64: 24, 1>}, {pipeline_mode = #tpu.pipeline_mode<synchronous>, transform_indices = @transform_6, window_bounds = array<i64: 16, 80>}, {pipeline_mode = #tpu.pipeline_mode<synchronous>, transform_indices = @transform_7, window_bounds = array<i64: 16, 1>}, {pipeline_mode = #tpu.pipeline_mode<synchronous>, transform_indices = @transform_8, window_bounds = array<i64: 16, 80>}, {pipeline_mode = #tpu.pipeline_mode<synchronous>, transform_indices = @transform_9, window_bounds = array<i64: 16, 1>}, {pipeline_mode = #tpu.pipeline_mode<synchronous>, transform_indices = @transform_10, window_bounds = array<i64: 32, 64>}, {pipeline_mode = #tpu.pipeline_mode<synchronous>, transform_indices = @transform_11, window_bounds = array<i64: 32, 1>}, {pipeline_mode = #tpu.pipeline_mode<synchronous>, transform_indices = @transform_12, window_bounds = array<i64: 9, 256>}, {transform_indices = @transform_13, window_bounds = array<i64: 1, 32, 256>}]} {
    %c0 = arith.constant 0 : index
    %c0_0 = arith.constant 0 : index
    %c0_1 = arith.constant 0 : index
    %0 = vector.load %arg1[%c0, %c0_0, %c0_1] : memref<1x32x256xf32, #tpu.memory_space<vmem>>, vector<1x32x256xf32>
    %1 = vector.shape_cast %0 : vector<1x32x256xf32> to vector<32x256xf32>
    %c0_2 = arith.constant 0 : index
    %c0_3 = arith.constant 0 : index
    %2 = vector.load %arg13[%c0_2, %c0_3] : memref<9x256xf32, #tpu.memory_space<vmem>>, vector<9x256xf32>
    %cst = arith.constant dense<0.000000e+00> : vector<32xf32>
    %3 = vector.multi_reduction <add>, %1, %cst [1] : vector<32x256xf32> to vector<32xf32>
    %4 = vector.shape_cast %3 : vector<32xf32> to vector<32x1xf32>
    %cst_4 = arith.constant 3.906250e-03 : f32
    %5 = vector.broadcast %cst_4 : f32 to vector<32x1xf32>
    %6 = arith.mulf %4, %5 : vector<32x1xf32>
    %7 = vector.shape_cast %6 : vector<32x1xf32> to vector<32x1xf32>
    %8 = vector.broadcast %7 : vector<32x1xf32> to vector<32x128xf32>
    %c0_5 = arith.constant 0 : index
    %c0_6 = arith.constant 0 : index
    %9 = vector.load %arg2[%c0_5, %c0_6] : memref<32x32xf32, #tpu.memory_space<vmem>>, vector<32x32xf32>
    %cst_7 = arith.constant dense<0.000000e+00> : vector<32x128xf32>
    %10 = tpu.matmul %9, %8, %cst_7 {dimension_numbers = #tpu.dot_dimension_numbers<[1], [0], [0], [1], [0, 0, 1, 1], [], []>} : vector<32x32xf32>, vector<32x128xf32>, vector<32x128xf32> -> vector<32x128xf32>
    %11 = vector.extract_strided_slice %10 {offsets = [0, 0], sizes = [32, 1], strides = [1, 1]} : vector<32x128xf32> to vector<32x1xf32>
    %cst_8 = arith.constant 0.000000e+00 : f32
    %12 = vector.broadcast %cst_8 : f32 to vector<32x1xf32>
    %13 = arith.subf %12, %11 : vector<32x1xf32>
    %14 = math.exp %13 : vector<32x1xf32>
    %cst_9 = arith.constant 1.000000e+00 : f32
    %15 = vector.broadcast %cst_9 : f32 to vector<32x1xf32>
    %16 = arith.addf %15, %14 : vector<32x1xf32>
    %17 = tpu.reciprocal %16 {approx = true} : vector<32x1xf32> -> vector<32x1xf32>
    %18 = vector.broadcast %17 : vector<32x1xf32> to vector<32x256xf32>
    %19 = arith.mulf %1, %18 : vector<32x256xf32>
    %c32_i32 = arith.constant 32 : i32
    %20 = tpu.dynamic_rotate %19 by %c32_i32 dim 1 : vector<32x256xf32>, i32 -> vector<32x256xf32>
    %21 = vector.extract_strided_slice %2 {offsets = [6, 0], sizes = [1, 256], strides = [1, 1]} : vector<9x256xf32> to vector<1x256xf32>
    %22 = vector.broadcast %21 : vector<1x256xf32> to vector<32x256xf32>
    %23 = arith.mulf %20, %22 : vector<32x256xf32>
    %c16_i32 = arith.constant 16 : i32
    %24 = tpu.dynamic_rotate %19 by %c16_i32 dim 1 : vector<32x256xf32>, i32 -> vector<32x256xf32>
    %25 = vector.extract_strided_slice %2 {offsets = [5, 0], sizes = [1, 256], strides = [1, 1]} : vector<9x256xf32> to vector<1x256xf32>
    %26 = vector.broadcast %25 : vector<1x256xf32> to vector<32x256xf32>
    %27 = arith.mulf %24, %26 : vector<32x256xf32>
    %c240_i32 = arith.constant 240 : i32
    %28 = tpu.dynamic_rotate %19 by %c240_i32 dim 1 : vector<32x256xf32>, i32 -> vector<32x256xf32>
    %29 = vector.extract_strided_slice %2 {offsets = [7, 0], sizes = [1, 256], strides = [1, 1]} : vector<9x256xf32> to vector<1x256xf32>
    %30 = vector.broadcast %29 : vector<1x256xf32> to vector<32x256xf32>
    %31 = arith.mulf %28, %30 : vector<32x256xf32>
    %c224_i32 = arith.constant 224 : i32
    %32 = tpu.dynamic_rotate %19 by %c224_i32 dim 1 : vector<32x256xf32>, i32 -> vector<32x256xf32>
    %33 = vector.extract_strided_slice %2 {offsets = [8, 0], sizes = [1, 256], strides = [1, 1]} : vector<9x256xf32> to vector<1x256xf32>
    %34 = vector.broadcast %33 : vector<1x256xf32> to vector<32x256xf32>
    %35 = arith.mulf %32, %34 : vector<32x256xf32>
    %36 = tpu.concatenate %23, %27, %19, %31, %35 in 0 : vector<32x256xf32>, vector<32x256xf32>, vector<32x256xf32>, vector<32x256xf32>, vector<32x256xf32> -> vector<160x256xf32>
    %c0_10 = arith.constant 0 : index
    %c0_11 = arith.constant 0 : index
    %37 = vector.load %arg3[%c0_10, %c0_11] : memref<32x160xbf16, #tpu.memory_space<vmem>>, vector<32x160xbf16>
    %38 = arith.truncf %36 : vector<160x256xf32> to vector<160x256xbf16>
    %cst_12 = arith.constant dense<0.000000e+00> : vector<32x256xf32>
    %39 = tpu.matmul %37, %38, %cst_12 {dimension_numbers = #tpu.dot_dimension_numbers<[1], [0], [0], [1], [0, 0, 1, 1], [], []>} : vector<32x160xbf16>, vector<160x256xbf16>, vector<32x256xf32> -> vector<32x256xf32>
    %c0_13 = arith.constant 0 : index
    %c0_14 = arith.constant 0 : index
    %40 = vector.load %arg4[%c0_13, %c0_14] : memref<32x1xf32, #tpu.memory_space<vmem>>, vector<32x1xf32>
    %41 = vector.broadcast %40 : vector<32x1xf32> to vector<32x256xf32>
    %42 = arith.addf %39, %41 : vector<32x256xf32>
    %cst_15 = arith.constant 0.000000e+00 : f32
    %43 = vector.broadcast %cst_15 : f32 to vector<32x256xf32>
    %44 = arith.subf %43, %42 : vector<32x256xf32>
    %45 = math.exp %44 : vector<32x256xf32>
    %cst_16 = arith.constant 1.000000e+00 : f32
    %46 = vector.broadcast %cst_16 : f32 to vector<32x256xf32>
    %47 = arith.addf %46, %45 : vector<32x256xf32>
    %48 = tpu.reciprocal %47 {approx = true} : vector<32x256xf32> -> vector<32x256xf32>
    %49 = arith.mulf %42, %48 : vector<32x256xf32>
    %50 = vector.extract_strided_slice %49 {offsets = [24, 0], sizes = [8, 256], strides = [1, 1]} : vector<32x256xf32> to vector<8x256xf32>
    %51 = arith.addf %19, %27 : vector<32x256xf32>
    %52 = arith.addf %51, %31 : vector<32x256xf32>
    %c1_i32 = arith.constant 1 : i32
    %53 = tpu.dynamic_rotate %52 by %c1_i32 dim 1 : vector<32x256xf32>, i32 -> vector<32x256xf32>
    %54 = vector.extract_strided_slice %2 {offsets = [1, 0], sizes = [1, 256], strides = [1, 1]} : vector<9x256xf32> to vector<1x256xf32>
    %55 = vector.broadcast %54 : vector<1x256xf32> to vector<32x256xf32>
    %56 = arith.mulf %53, %55 : vector<32x256xf32>
    %57 = arith.addf %52, %56 : vector<32x256xf32>
    %c255_i32 = arith.constant 255 : i32
    %58 = tpu.dynamic_rotate %52 by %c255_i32 dim 1 : vector<32x256xf32>, i32 -> vector<32x256xf32>
    %59 = vector.extract_strided_slice %2 {offsets = [3, 0], sizes = [1, 256], strides = [1, 1]} : vector<9x256xf32> to vector<1x256xf32>
    %60 = vector.broadcast %59 : vector<1x256xf32> to vector<32x256xf32>
    %61 = arith.mulf %58, %60 : vector<32x256xf32>
    %62 = arith.addf %57, %61 : vector<32x256xf32>
    %cst_17 = arith.constant 0.111111112 : f32
    %63 = vector.broadcast %cst_17 : f32 to vector<32x256xf32>
    %64 = arith.mulf %62, %63 : vector<32x256xf32>
    %65 = vector.extract_strided_slice %49 {offsets = [0, 0], sizes = [24, 256], strides = [1, 1]} : vector<32x256xf32> to vector<24x256xf32>
    %c2_i32 = arith.constant 2 : i32
    %66 = tpu.dynamic_rotate %65 by %c2_i32 dim 1 : vector<24x256xf32>, i32 -> vector<24x256xf32>
    %67 = vector.extract_strided_slice %2 {offsets = [2, 0], sizes = [1, 256], strides = [1, 1]} : vector<9x256xf32> to vector<1x256xf32>
    %68 = vector.broadcast %67 : vector<1x256xf32> to vector<24x256xf32>
    %69 = arith.mulf %66, %68 : vector<24x256xf32>
    %c1_i32_18 = arith.constant 1 : i32
    %70 = tpu.dynamic_rotate %65 by %c1_i32_18 dim 1 : vector<24x256xf32>, i32 -> vector<24x256xf32>
    %71 = vector.extract_strided_slice %2 {offsets = [1, 0], sizes = [1, 256], strides = [1, 1]} : vector<9x256xf32> to vector<1x256xf32>
    %72 = vector.broadcast %71 : vector<1x256xf32> to vector<24x256xf32>
    %73 = arith.mulf %70, %72 : vector<24x256xf32>
    %c255_i32_19 = arith.constant 255 : i32
    %74 = tpu.dynamic_rotate %65 by %c255_i32_19 dim 1 : vector<24x256xf32>, i32 -> vector<24x256xf32>
    %75 = vector.extract_strided_slice %2 {offsets = [3, 0], sizes = [1, 256], strides = [1, 1]} : vector<9x256xf32> to vector<1x256xf32>
    %76 = vector.broadcast %75 : vector<1x256xf32> to vector<24x256xf32>
    %77 = arith.mulf %74, %76 : vector<24x256xf32>
    %c254_i32 = arith.constant 254 : i32
    %78 = tpu.dynamic_rotate %65 by %c254_i32 dim 1 : vector<24x256xf32>, i32 -> vector<24x256xf32>
    %79 = vector.extract_strided_slice %2 {offsets = [4, 0], sizes = [1, 256], strides = [1, 1]} : vector<9x256xf32> to vector<1x256xf32>
    %80 = vector.broadcast %79 : vector<1x256xf32> to vector<24x256xf32>
    %81 = arith.mulf %78, %80 : vector<24x256xf32>
    %82 = tpu.concatenate %69, %73, %65, %77, %81 in 0 : vector<24x256xf32>, vector<24x256xf32>, vector<24x256xf32>, vector<24x256xf32>, vector<24x256xf32> -> vector<120x256xf32>
    %c0_20 = arith.constant 0 : index
    %c0_21 = arith.constant 0 : index
    %83 = vector.load %arg5[%c0_20, %c0_21] : memref<24x120xbf16, #tpu.memory_space<vmem>>, vector<24x120xbf16>
    %84 = arith.truncf %82 : vector<120x256xf32> to vector<120x256xbf16>
    %cst_22 = arith.constant dense<0.000000e+00> : vector<24x256xf32>
    %85 = tpu.matmul %83, %84, %cst_22 {dimension_numbers = #tpu.dot_dimension_numbers<[1], [0], [0], [1], [0, 0, 1, 1], [], []>} : vector<24x120xbf16>, vector<120x256xbf16>, vector<24x256xf32> -> vector<24x256xf32>
    %c0_23 = arith.constant 0 : index
    %c0_24 = arith.constant 0 : index
    %86 = vector.load %arg6[%c0_23, %c0_24] : memref<24x1xf32, #tpu.memory_space<vmem>>, vector<24x1xf32>
    %87 = vector.broadcast %86 : vector<24x1xf32> to vector<24x256xf32>
    %88 = arith.addf %85, %87 : vector<24x256xf32>
    %cst_25 = arith.constant 0.000000e+00 : f32
    %89 = vector.broadcast %cst_25 : f32 to vector<24x256xf32>
    %90 = arith.subf %89, %88 : vector<24x256xf32>
    %91 = math.exp %90 : vector<24x256xf32>
    %cst_26 = arith.constant 1.000000e+00 : f32
    %92 = vector.broadcast %cst_26 : f32 to vector<24x256xf32>
    %93 = arith.addf %92, %91 : vector<24x256xf32>
    %94 = tpu.reciprocal %93 {approx = true} : vector<24x256xf32> -> vector<24x256xf32>
    %95 = arith.mulf %88, %94 : vector<24x256xf32>
    %96 = vector.extract_strided_slice %95 {offsets = [0, 0], sizes = [8, 256], strides = [1, 1]} : vector<24x256xf32> to vector<8x256xf32>
    %97 = vector.extract_strided_slice %95 {offsets = [8, 0], sizes = [16, 256], strides = [1, 1]} : vector<24x256xf32> to vector<16x256xf32>
    %c32_i32_27 = arith.constant 32 : i32
    %98 = tpu.dynamic_rotate %97 by %c32_i32_27 dim 1 : vector<16x256xf32>, i32 -> vector<16x256xf32>
    %99 = vector.extract_strided_slice %2 {offsets = [6, 0], sizes = [1, 256], strides = [1, 1]} : vector<9x256xf32> to vector<1x256xf32>
    %100 = vector.broadcast %99 : vector<1x256xf32> to vector<16x256xf32>
    %101 = arith.mulf %98, %100 : vector<16x256xf32>
    %c16_i32_28 = arith.constant 16 : i32
    %102 = tpu.dynamic_rotate %97 by %c16_i32_28 dim 1 : vector<16x256xf32>, i32 -> vector<16x256xf32>
    %103 = vector.extract_strided_slice %2 {offsets = [5, 0], sizes = [1, 256], strides = [1, 1]} : vector<9x256xf32> to vector<1x256xf32>
    %104 = vector.broadcast %103 : vector<1x256xf32> to vector<16x256xf32>
    %105 = arith.mulf %102, %104 : vector<16x256xf32>
    %c240_i32_29 = arith.constant 240 : i32
    %106 = tpu.dynamic_rotate %97 by %c240_i32_29 dim 1 : vector<16x256xf32>, i32 -> vector<16x256xf32>
    %107 = vector.extract_strided_slice %2 {offsets = [7, 0], sizes = [1, 256], strides = [1, 1]} : vector<9x256xf32> to vector<1x256xf32>
    %108 = vector.broadcast %107 : vector<1x256xf32> to vector<16x256xf32>
    %109 = arith.mulf %106, %108 : vector<16x256xf32>
    %c224_i32_30 = arith.constant 224 : i32
    %110 = tpu.dynamic_rotate %97 by %c224_i32_30 dim 1 : vector<16x256xf32>, i32 -> vector<16x256xf32>
    %111 = vector.extract_strided_slice %2 {offsets = [8, 0], sizes = [1, 256], strides = [1, 1]} : vector<9x256xf32> to vector<1x256xf32>
    %112 = vector.broadcast %111 : vector<1x256xf32> to vector<16x256xf32>
    %113 = arith.mulf %110, %112 : vector<16x256xf32>
    %114 = tpu.concatenate %101, %105, %97, %109, %113 in 0 : vector<16x256xf32>, vector<16x256xf32>, vector<16x256xf32>, vector<16x256xf32>, vector<16x256xf32> -> vector<80x256xf32>
    %c0_31 = arith.constant 0 : index
    %c0_32 = arith.constant 0 : index
    %115 = vector.load %arg7[%c0_31, %c0_32] : memref<16x80xbf16, #tpu.memory_space<vmem>>, vector<16x80xbf16>
    %116 = arith.truncf %114 : vector<80x256xf32> to vector<80x256xbf16>
    %cst_33 = arith.constant dense<0.000000e+00> : vector<16x256xf32>
    %117 = tpu.matmul %115, %116, %cst_33 {dimension_numbers = #tpu.dot_dimension_numbers<[1], [0], [0], [1], [0, 0, 1, 1], [], []>} : vector<16x80xbf16>, vector<80x256xbf16>, vector<16x256xf32> -> vector<16x256xf32>
    %c0_34 = arith.constant 0 : index
    %c0_35 = arith.constant 0 : index
    %118 = vector.load %arg8[%c0_34, %c0_35] : memref<16x1xf32, #tpu.memory_space<vmem>>, vector<16x1xf32>
    %119 = vector.broadcast %118 : vector<16x1xf32> to vector<16x256xf32>
    %120 = arith.addf %117, %119 : vector<16x256xf32>
    %cst_36 = arith.constant 0.000000e+00 : f32
    %121 = vector.broadcast %cst_36 : f32 to vector<16x256xf32>
    %122 = arith.subf %121, %120 : vector<16x256xf32>
    %123 = math.exp %122 : vector<16x256xf32>
    %cst_37 = arith.constant 1.000000e+00 : f32
    %124 = vector.broadcast %cst_37 : f32 to vector<16x256xf32>
    %125 = arith.addf %124, %123 : vector<16x256xf32>
    %126 = tpu.reciprocal %125 {approx = true} : vector<16x256xf32> -> vector<16x256xf32>
    %127 = arith.mulf %120, %126 : vector<16x256xf32>
    %c2_i32_38 = arith.constant 2 : i32
    %128 = tpu.dynamic_rotate %127 by %c2_i32_38 dim 1 : vector<16x256xf32>, i32 -> vector<16x256xf32>
    %129 = vector.extract_strided_slice %2 {offsets = [2, 0], sizes = [1, 256], strides = [1, 1]} : vector<9x256xf32> to vector<1x256xf32>
    %130 = vector.broadcast %129 : vector<1x256xf32> to vector<16x256xf32>
    %131 = arith.mulf %128, %130 : vector<16x256xf32>
    %c1_i32_39 = arith.constant 1 : i32
    %132 = tpu.dynamic_rotate %127 by %c1_i32_39 dim 1 : vector<16x256xf32>, i32 -> vector<16x256xf32>
    %133 = vector.extract_strided_slice %2 {offsets = [1, 0], sizes = [1, 256], strides = [1, 1]} : vector<9x256xf32> to vector<1x256xf32>
    %134 = vector.broadcast %133 : vector<1x256xf32> to vector<16x256xf32>
    %135 = arith.mulf %132, %134 : vector<16x256xf32>
    %c255_i32_40 = arith.constant 255 : i32
    %136 = tpu.dynamic_rotate %127 by %c255_i32_40 dim 1 : vector<16x256xf32>, i32 -> vector<16x256xf32>
    %137 = vector.extract_strided_slice %2 {offsets = [3, 0], sizes = [1, 256], strides = [1, 1]} : vector<9x256xf32> to vector<1x256xf32>
    %138 = vector.broadcast %137 : vector<1x256xf32> to vector<16x256xf32>
    %139 = arith.mulf %136, %138 : vector<16x256xf32>
    %c254_i32_41 = arith.constant 254 : i32
    %140 = tpu.dynamic_rotate %127 by %c254_i32_41 dim 1 : vector<16x256xf32>, i32 -> vector<16x256xf32>
    %141 = vector.extract_strided_slice %2 {offsets = [4, 0], sizes = [1, 256], strides = [1, 1]} : vector<9x256xf32> to vector<1x256xf32>
    %142 = vector.broadcast %141 : vector<1x256xf32> to vector<16x256xf32>
    %143 = arith.mulf %140, %142 : vector<16x256xf32>
    %144 = tpu.concatenate %131, %135, %127, %139, %143 in 0 : vector<16x256xf32>, vector<16x256xf32>, vector<16x256xf32>, vector<16x256xf32>, vector<16x256xf32> -> vector<80x256xf32>
    %c0_42 = arith.constant 0 : index
    %c0_43 = arith.constant 0 : index
    %145 = vector.load %arg9[%c0_42, %c0_43] : memref<16x80xbf16, #tpu.memory_space<vmem>>, vector<16x80xbf16>
    %146 = arith.truncf %144 : vector<80x256xf32> to vector<80x256xbf16>
    %cst_44 = arith.constant dense<0.000000e+00> : vector<16x256xf32>
    %147 = tpu.matmul %145, %146, %cst_44 {dimension_numbers = #tpu.dot_dimension_numbers<[1], [0], [0], [1], [0, 0, 1, 1], [], []>} : vector<16x80xbf16>, vector<80x256xbf16>, vector<16x256xf32> -> vector<16x256xf32>
    %c0_45 = arith.constant 0 : index
    %c0_46 = arith.constant 0 : index
    %148 = vector.load %arg10[%c0_45, %c0_46] : memref<16x1xf32, #tpu.memory_space<vmem>>, vector<16x1xf32>
    %149 = vector.broadcast %148 : vector<16x1xf32> to vector<16x256xf32>
    %150 = arith.addf %147, %149 : vector<16x256xf32>
    %cst_47 = arith.constant 0.000000e+00 : f32
    %151 = vector.broadcast %cst_47 : f32 to vector<16x256xf32>
    %152 = arith.subf %151, %150 : vector<16x256xf32>
    %153 = math.exp %152 : vector<16x256xf32>
    %cst_48 = arith.constant 1.000000e+00 : f32
    %154 = vector.broadcast %cst_48 : f32 to vector<16x256xf32>
    %155 = arith.addf %154, %153 : vector<16x256xf32>
    %156 = tpu.reciprocal %155 {approx = true} : vector<16x256xf32> -> vector<16x256xf32>
    %157 = arith.mulf %150, %156 : vector<16x256xf32>
    %158 = vector.extract_strided_slice %157 {offsets = [0, 0], sizes = [8, 256], strides = [1, 1]} : vector<16x256xf32> to vector<8x256xf32>
    %159 = vector.extract_strided_slice %157 {offsets = [8, 0], sizes = [8, 256], strides = [1, 1]} : vector<16x256xf32> to vector<8x256xf32>
    %160 = tpu.concatenate %50, %64, %96, %158, %159 in 0 : vector<8x256xf32>, vector<32x256xf32>, vector<8x256xf32>, vector<8x256xf32>, vector<8x256xf32> -> vector<64x256xf32>
    %c0_49 = arith.constant 0 : index
    %c0_50 = arith.constant 0 : index
    %161 = vector.load %arg11[%c0_49, %c0_50] : memref<32x64xbf16, #tpu.memory_space<vmem>>, vector<32x64xbf16>
    %162 = arith.truncf %160 : vector<64x256xf32> to vector<64x256xbf16>
    %cst_51 = arith.constant dense<0.000000e+00> : vector<32x256xf32>
    %163 = tpu.matmul %161, %162, %cst_51 {dimension_numbers = #tpu.dot_dimension_numbers<[1], [0], [0], [1], [0, 0, 1, 1], [], []>} : vector<32x64xbf16>, vector<64x256xbf16>, vector<32x256xf32> -> vector<32x256xf32>
    %c0_52 = arith.constant 0 : index
    %c0_53 = arith.constant 0 : index
    %164 = vector.load %arg12[%c0_52, %c0_53] : memref<32x1xf32, #tpu.memory_space<vmem>>, vector<32x1xf32>
    %165 = vector.broadcast %164 : vector<32x1xf32> to vector<32x256xf32>
    %166 = arith.addf %163, %165 : vector<32x256xf32>
    %cst_54 = arith.constant 0.000000e+00 : f32
    %167 = vector.broadcast %cst_54 : f32 to vector<32x256xf32>
    %168 = arith.subf %167, %166 : vector<32x256xf32>
    %169 = math.exp %168 : vector<32x256xf32>
    %cst_55 = arith.constant 1.000000e+00 : f32
    %170 = vector.broadcast %cst_55 : f32 to vector<32x256xf32>
    %171 = arith.addf %170, %169 : vector<32x256xf32>
    %172 = tpu.reciprocal %171 {approx = true} : vector<32x256xf32> -> vector<32x256xf32>
    %173 = arith.mulf %166, %172 : vector<32x256xf32>
    %174 = arith.addf %1, %173 : vector<32x256xf32>
    %c0_56 = arith.constant 0 : index
    %c0_57 = arith.constant 0 : index
    %c0_58 = arith.constant 0 : index
    %175 = vector.load %arg14[%c0_56, %c0_57, %c0_58] : memref<1x32x256xf32, #tpu.memory_space<vmem>>, vector<1x32x256xf32>
    %176 = vector.shape_cast %175 : vector<1x32x256xf32> to vector<32x256xf32>
    %177 = vector.shape_cast %174 : vector<32x256xf32> to vector<1x32x256xf32>
    tpu.vector_store %arg14[%c0_56, %c0_57, %c0_58], %177 {strides = array<i32>} : memref<1x32x256xf32, #tpu.memory_space<vmem>>, vector<1x32x256xf32>,
    return
  }
  func.func @transform_0(%arg0: i32) -> (i32, i32, i32) {
    %c0_i32 = arith.constant 0 : i32
    %c0_i32_0 = arith.constant 0 : i32
    %c0_i32_1 = arith.constant 0 : i32
    return %arg0, %c0_i32, %c0_i32_0 : i32, i32, i32
  }
  func.func @transform_1(%arg0: i32) -> (i32, i32) {
    %c0_i32 = arith.constant 0 : i32
    %c0_i32_0 = arith.constant 0 : i32
    %c0_i32_1 = arith.constant 0 : i32
    return %c0_i32, %c0_i32_0 : i32, i32
  }
  func.func @transform_2(%arg0: i32) -> (i32, i32) {
    %c0_i32 = arith.constant 0 : i32
    %c0_i32_0 = arith.constant 0 : i32
    %c0_i32_1 = arith.constant 0 : i32
    return %c0_i32, %c0_i32_0 : i32, i32
  }
  func.func @transform_3(%arg0: i32) -> (i32, i32) {
    %c0_i32 = arith.constant 0 : i32
    %c0_i32_0 = arith.constant 0 : i32
    %c0_i32_1 = arith.constant 0 : i32
    return %c0_i32, %c0_i32_0 : i32, i32
  }
  func.func @transform_4(%arg0: i32) -> (i32, i32) {
    %c0_i32 = arith.constant 0 : i32
    %c0_i32_0 = arith.constant 0 : i32
    %c0_i32_1 = arith.constant 0 : i32
    return %c0_i32, %c0_i32_0 : i32, i32
  }
  func.func @transform_5(%arg0: i32) -> (i32, i32) {
    %c0_i32 = arith.constant 0 : i32
    %c0_i32_0 = arith.constant 0 : i32
    %c0_i32_1 = arith.constant 0 : i32
    return %c0_i32, %c0_i32_0 : i32, i32
  }
  func.func @transform_6(%arg0: i32) -> (i32, i32) {
    %c0_i32 = arith.constant 0 : i32
    %c0_i32_0 = arith.constant 0 : i32
    %c0_i32_1 = arith.constant 0 : i32
    return %c0_i32, %c0_i32_0 : i32, i32
  }
  func.func @transform_7(%arg0: i32) -> (i32, i32) {
    %c0_i32 = arith.constant 0 : i32
    %c0_i32_0 = arith.constant 0 : i32
    %c0_i32_1 = arith.constant 0 : i32
    return %c0_i32, %c0_i32_0 : i32, i32
  }
  func.func @transform_8(%arg0: i32) -> (i32, i32) {
    %c0_i32 = arith.constant 0 : i32
    %c0_i32_0 = arith.constant 0 : i32
    %c0_i32_1 = arith.constant 0 : i32
    return %c0_i32, %c0_i32_0 : i32, i32
  }
  func.func @transform_9(%arg0: i32) -> (i32, i32) {
    %c0_i32 = arith.constant 0 : i32
    %c0_i32_0 = arith.constant 0 : i32
    %c0_i32_1 = arith.constant 0 : i32
    return %c0_i32, %c0_i32_0 : i32, i32
  }
  func.func @transform_10(%arg0: i32) -> (i32, i32) {
    %c0_i32 = arith.constant 0 : i32
    %c0_i32_0 = arith.constant 0 : i32
    %c0_i32_1 = arith.constant 0 : i32
    return %c0_i32, %c0_i32_0 : i32, i32
  }
  func.func @transform_11(%arg0: i32) -> (i32, i32) {
    %c0_i32 = arith.constant 0 : i32
    %c0_i32_0 = arith.constant 0 : i32
    %c0_i32_1 = arith.constant 0 : i32
    return %c0_i32, %c0_i32_0 : i32, i32
  }
  func.func @transform_12(%arg0: i32) -> (i32, i32) {
    %c0_i32 = arith.constant 0 : i32
    %c0_i32_0 = arith.constant 0 : i32
    %c0_i32_1 = arith.constant 0 : i32
    return %c0_i32, %c0_i32_0 : i32, i32
  }
  func.func @transform_13(%arg0: i32) -> (i32, i32, i32) {
    %c0_i32 = arith.constant 0 : i32
    %c0_i32_0 = arith.constant 0 : i32
    %c0_i32_1 = arith.constant 0 : i32
    return %arg0, %c0_i32, %c0_i32_0 : i32, i32, i32
  }
}

</mosaic_0001>

<llo_original>
// kernel: msfe_forward.1
$region0: #{msfe_forward.1}
  #allocation0 [shape = 'u32[]', space=smem, size = 0x4, offset = 0x4, fixed_abs, tag = 'smem constant byte address 0x4 - core index']
  #allocation1 [shape = 'u32[144,128]{1,0:T(1,128)}', space=vmem, size = 0x12000, scoped, tag = 'internal scratch']
  %s0 = inlined_call_operand.vmem [shape: f32[2,32,256], index: 0, kind: input, shape index: {}]
  %s1 = inlined_call_operand.vmem [shape: f32[32,32], index: 1, kind: input, shape index: {}]
  %s2 = inlined_call_operand.vmem [shape: bf16[32,160], index: 2, kind: input, shape index: {}]
  %s3 = inlined_call_operand.vmem [shape: f32[32,1], index: 3, kind: input, shape index: {}]
  %s4 = inlined_call_operand.vmem [shape: bf16[24,120], index: 4, kind: input, shape index: {}]
  %s5 = inlined_call_operand.vmem [shape: f32[24,1], index: 5, kind: input, shape index: {}]
  %s6 = inlined_call_operand.vmem [shape: bf16[16,80], index: 6, kind: input, shape index: {}]
  %s7 = inlined_call_operand.vmem [shape: f32[16,1], index: 7, kind: input, shape index: {}]
  %s8 = inlined_call_operand.vmem [shape: bf16[16,80], index: 8, kind: input, shape index: {}]
  %s9 = inlined_call_operand.vmem [shape: f32[16,1], index: 9, kind: input, shape index: {}]
  %s10 = inlined_call_operand.vmem [shape: bf16[32,64], index: 10, kind: input, shape index: {}]
  %s11 = inlined_call_operand.vmem [shape: f32[32,1], index: 11, kind: input, shape index: {}]
  %s12 = inlined_call_operand.vmem [shape: f32[9,256], index: 12, kind: input, shape index: {}]
  %s13 = inlined_call_operand.vmem [shape: f32[2,32,256], index: 13, kind: output, shape index: {}]
  %s14 = sld [smem:[#allocation0]]
  $region85: #{msfe_forward.1} parent=0
    _
  %s16 = ssub.s32 1, %s14
  %s17 = scalar_select 0, %s16, %s14
  loop: start=0, step=1, limit=4
  $region2: #{msfe_forward.1} parent=0 // loop_pre_header
    _
  $region3: #{msfe_forward.1} parent=0 // loop_header
    %s19 = sphi 0, %s23
    %p20 = scmp.ge.s32.totalorder %s19, 4
    %s29 = sphi 0, %s31
    %s32 = sphi 0, %s29
    %s33 = sphi 0, %s32
    %s49 = sphi 0, %s33
    %s53 = sphi 0, %s53
    %s55 = sphi 0, %s53
    %s56 = sphi 0, %s55
    %s70 = sphi 0, %s56
    %s74 = sphi 0, %s74
    %s76 = sphi 0, %s74
    %s77 = sphi 0, %s76
    %s91 = sphi 0, %s77
    %s95 = sphi 0, %s95
    %s97 = sphi 0, %s95
    %s98 = sphi 0, %s97
    %s112 = sphi 0, %s98
    %s116 = sphi 0, %s116
    %s118 = sphi 0, %s116
    %s119 = sphi 0, %s118
    %s133 = sphi 0, %s119
    %s137 = sphi 0, %s137
    %s139 = sphi 0, %s137
    %s140 = sphi 0, %s139
    %s154 = sphi 0, %s140
    %s158 = sphi 0, %s158
    %s160 = sphi 0, %s158
    %s161 = sphi 0, %s160
    %s175 = sphi 0, %s161
    %s179 = sphi 0, %s179
    %s181 = sphi 0, %s179
    %s182 = sphi 0, %s181
    %s196 = sphi 0, %s182
    %s200 = sphi 0, %s200
    %s202 = sphi 0, %s200
    %s203 = sphi 0, %s202
    %s217 = sphi 0, %s203
    %s221 = sphi 0, %s221
    %s223 = sphi 0, %s221
    %s224 = sphi 0, %s223
    %s238 = sphi 0, %s224
    %s242 = sphi 0, %s242
    %s244 = sphi 0, %s242
    %s245 = sphi 0, %s244
    %s259 = sphi 0, %s245
    %s263 = sphi 0, %s263
    %s265 = sphi 0, %s263
    %s266 = sphi 0, %s265
    %s280 = sphi 0, %s266
    %s284 = sphi 0, %s284
    %s286 = sphi 0, %s284
    %s287 = sphi 0, %s286
    %s301 = sphi 0, %s287
    %s307 = sphi 0, %s309
    %s310 = sphi 0, %s307
    %s311 = sphi 0, %s310
    %s327 = sphi 0, %s311
  $region4: #{msfe_forward.1} parent=0 // loop_header_branch
    %22 = sbr.rel (%p20) target = $region8
  $region5: #{msfe_forward.1} parent=0 // loop_body
    %s24 = ssub.s32 %s19, 1
    %s25 = ssub.s32 %s19, 2
    %s26 = sadd.s32 %s19, 1
    %s27 = ssub.s32 %s19, %s26
    %p28 = scmp.eq.s32.totalorder %s27, 0
    %s30 = sadd.s32 %s29, 1
    %s31 = scalar_select %p28, %s29, %s30
    %p34 = pneg %p28
    %p35 = scmp.eq.s32.totalorder %s19, 1
    %p36 = por %p34, %p35
    %p37 = scmp.ne.s32.totalorder %s29, %s32
    %p38 = scmp.eq.s32.totalorder %s19, 0
    %p39 = por %p37, %p38
    %p40 = scmp.ne.s32.totalorder %s29, %s32
    %p41 = scmp.eq.s32.totalorder %s24, 1
    %p42 = por %p40, %p41
    %p43 = scmp.ne.s32.totalorder %s32, %s33
    %p44 = scmp.eq.s32.totalorder %s24, 0
    %p45 = por %p43, %p44
    %p46 = scmp.ne.s32.totalorder %s32, %s33
    %p47 = scmp.eq.s32.totalorder %s25, 1
    %p48 = por %p46, %p47
    %p50 = scmp.ne.s32.totalorder %s33, %s49
    %p51 = scmp.eq.s32.totalorder %s25, 0
    %p52 = por %p50, %p51
    %s54 = sadd.s32 %s53, 1
    %p57 = scmp.eq.s32.totalorder %s19, 1
    %p58 = scmp.ne.s32.totalorder %s53, %s55
    %p59 = scmp.eq.s32.totalorder %s19, 0
    %p60 = por %p58, %p59
    %p61 = scmp.ne.s32.totalorder %s53, %s55
    %p62 = scmp.eq.s32.totalorder %s24, 1
    %p63 = por %p61, %p62
    %p64 = scmp.ne.s32.totalorder %s55, %s56
    %p65 = scmp.eq.s32.totalorder %s24, 0
    %p66 = por %p64, %p65
    %p67 = scmp.ne.s32.totalorder %s55, %s56
    %p68 = scmp.eq.s32.totalorder %s25, 1
    %p69 = por %p67, %p68
    %p71 = scmp.ne.s32.totalorder %s56, %s70
    %p72 = scmp.eq.s32.totalorder %s25, 0
    %p73 = por %p71, %p72
    %s75 = sadd.s32 %s74, 1
    %p78 = scmp.eq.s32.totalorder %s19, 1
    %p79 = scmp.ne.s32.totalorder %s74, %s76
    %p80 = scmp.eq.s32.totalorder %s19, 0
    %p81 = por %p79, %p80
    %p82 = scmp.ne.s32.totalorder %s74, %s76
    %p83 = scmp.eq.s32.totalorder %s24, 1
    %p84 = por %p82, %p83
    %p85 = scmp.ne.s32.totalorder %s76, %s77
    %p86 = scmp.eq.s32.totalorder %s24, 0
    %p87 = por %p85, %p86
    %p88 = scmp.ne.s32.totalorder %s76, %s77
    %p89 = scmp.eq.s32.totalorder %s25, 1
    %p90 = por %p88, %p89
    %p92 = scmp.ne.s32.totalorder %s77, %s91
    %p93 = scmp.eq.s32.totalorder %s25, 0
    %p94 = por %p92, %p93
    %s96 = sadd.s32 %s95, 1
    %p99 = scmp.eq.s32.totalorder %s19, 1
    %p100 = scmp.ne.s32.totalorder %s95, %s97
    %p101 = scmp.eq.s32.totalorder %s19, 0
    %p102 = por %p100, %p101
    %p103 = scmp.ne.s32.totalorder %s95, %s97
    %p104 = scmp.eq.s32.totalorder %s24, 1
    %p105 = por %p103, %p104
    %p106 = scmp.ne.s32.totalorder %s97, %s98
    %p107 = scmp.eq.s32.totalorder %s24, 0
    %p108 = por %p106, %p107
    %p109 = scmp.ne.s32.totalorder %s97, %s98
    %p110 = scmp.eq.s32.totalorder %s25, 1
    %p111 = por %p109, %p110
    %p113 = scmp.ne.s32.totalorder %s98, %s112
    %p114 = scmp.eq.s32.totalorder %s25, 0
    %p115 = por %p113, %p114
    %s117 = sadd.s32 %s116, 1
    %p120 = scmp.eq.s32.totalorder %s19, 1
    %p121 = scmp.ne.s32.totalorder %s116, %s118
    %p122 = scmp.eq.s32.totalorder %s19, 0
    %p123 = por %p121, %p122
    %p124 = scmp.ne.s32.totalorder %s116, %s118
    %p125 = scmp.eq.s32.totalorder %s24, 1
    %p126 = por %p124, %p125
    %p127 = scmp.ne.s32.totalorder %s118, %s119
    %p128 = scmp.eq.s32.totalorder %s24, 0
    %p129 = por %p127, %p128
    %p130 = scmp.ne.s32.totalorder %s118, %s119
    %p131 = scmp.eq.s32.totalorder %s25, 1
    %p132 = por %p130, %p131
    %p134 = scmp.ne.s32.totalorder %s119, %s133
    %p135 = scmp.eq.s32.totalorder %s25, 0
    %p136 = por %p134, %p135
    %s138 = sadd.s32 %s137, 1
    %p141 = scmp.eq.s32.totalorder %s19, 1
    %p142 = scmp.ne.s32.totalorder %s137, %s139
    %p143 = scmp.eq.s32.totalorder %s19, 0
    %p144 = por %p142, %p143
    %p145 = scmp.ne.s32.totalorder %s137, %s139
    %p146 = scmp.eq.s32.totalorder %s24, 1
    %p147 = por %p145, %p146
    %p148 = scmp.ne.s32.totalorder %s139, %s140
    %p149 = scmp.eq.s32.totalorder %s24, 0
    %p150 = por %p148, %p149
    %p151 = scmp.ne.s32.totalorder %s139, %s140
    %p152 = scmp.eq.s32.totalorder %s25, 1
    %p153 = por %p151, %p152
    %p155 = scmp.ne.s32.totalorder %s140, %s154
    %p156 = scmp.eq.s32.totalorder %s25, 0
    %p157 = por %p155, %p156
    %s159 = sadd.s32 %s158, 1
    %p162 = scmp.eq.s32.totalorder %s19, 1
    %p163 = scmp.ne.s32.totalorder %s158, %s160
    %p164 = scmp.eq.s32.totalorder %s19, 0
    %p165 = por %p163, %p164
    %p166 = scmp.ne.s32.totalorder %s158, %s160
    %p167 = scmp.eq.s32.totalorder %s24, 1
    %p168 = por %p166, %p167
    %p169 = scmp.ne.s32.totalorder %s160, %s161
    %p170 = scmp.eq.s32.totalorder %s24, 0
    %p171 = por %p169, %p170
    %p172 = scmp.ne.s32.totalorder %s160, %s161
    %p173 = scmp.eq.s32.totalorder %s25, 1
    %p174 = por %p172, %p173
    %p176 = scmp.ne.s32.totalorder %s161, %s175
    %p177 = scmp.eq.s32.totalorder %s25, 0
    %p178 = por %p176, %p177
    %s180 = sadd.s32 %s179, 1
    %p183 = scmp.eq.s32.totalorder %s19, 1
    %p184 = scmp.ne.s32.totalorder %s179, %s181
    %p185 = scmp.eq.s32.totalorder %s19, 0
    %p186 = por %p184, %p185
    %p187 = scmp.ne.s32.totalorder %s179, %s181
    %p188 = scmp.eq.s32.totalorder %s24, 1
    %p189 = por %p187, %p188
    %p190 = scmp.ne.s32.totalorder %s181, %s182
    %p191 = scmp.eq.s32.totalorder %s24, 0
    %p192 = por %p190, %p191
    %p193 = scmp.ne.s32.totalorder %s181, %s182
    %p194 = scmp.eq.s32.totalorder %s25, 1
    %p195 = por %p193, %p194
    %p197 = scmp.ne.s32.totalorder %s182, %s196
    %p198 = scmp.eq.s32.totalorder %s25, 0
    %p199 = por %p197, %p198
    %s201 = sadd.s32 %s200, 1
    %p204 = scmp.eq.s32.totalorder %s19, 1
    %p205 = scmp.ne.s32.totalorder %s200, %s202
    %p206 = scmp.eq.s32.totalorder %s19, 0
    %p207 = por %p205, %p206
    %p208 = scmp.ne.s32.totalorder %s200, %s202
    %p209 = scmp.eq.s32.totalorder %s24, 1
    %p210 = por %p208, %p209
    %p211 = scmp.ne.s32.totalorder %s202, %s203
    %p212 = scmp.eq.s32.totalorder %s24, 0
    %p213 = por %p211, %p212
    %p214 = scmp.ne.s32.totalorder %s202, %s203
    %p215 = scmp.eq.s32.totalorder %s25, 1
    %p216 = por %p214, %p215
    %p218 = scmp.ne.s32.totalorder %s203, %s217
    %p219 = scmp.eq.s32.totalorder %s25, 0
    %p220 = por %p218, %p219
    %s222 = sadd.s32 %s221, 1
    %p225 = scmp.eq.s32.totalorder %s19, 1
    %p226 = scmp.ne.s32.totalorder %s221, %s223
    %p227 = scmp.eq.s32.totalorder %s19, 0
    %p228 = por %p226, %p227
    %p229 = scmp.ne.s32.totalorder %s221, %s223
    %p230 = scmp.eq.s32.totalorder %s24, 1
    %p231 = por %p229, %p230
    %p232 = scmp.ne.s32.totalorder %s223, %s224
    %p233 = scmp.eq.s32.totalorder %s24, 0
    %p234 = por %p232, %p233
    %p235 = scmp.ne.s32.totalorder %s223, %s224
    %p236 = scmp.eq.s32.totalorder %s25, 1
    %p237 = por %p235, %p236
    %p239 = scmp.ne.s32.totalorder %s224, %s238
    %p240 = scmp.eq.s32.totalorder %s25, 0
    %p241 = por %p239, %p240
    %s243 = sadd.s32 %s242, 1
    %p246 = scmp.eq.s32.totalorder %s19, 1
    %p247 = scmp.ne.s32.totalorder %s242, %s244
    %p248 = scmp.eq.s32.totalorder %s19, 0
    %p249 = por %p247, %p248
    %p250 = scmp.ne.s32.totalorder %s242, %s244
    %p251 = scmp.eq.s32.totalorder %s24, 1
    %p252 = por %p250, %p251
    %p253 = scmp.ne.s32.totalorder %s244, %s245
    %p254 = scmp.eq.s32.totalorder %s24, 0
    %p255 = por %p253, %p254
    %p256 = scmp.ne.s32.totalorder %s244, %s245
    %p257 = scmp.eq.s32.totalorder %s25, 1
    %p258 = por %p256, %p257
    %p260 = scmp.ne.s32.totalorder %s245, %s259
    %p261 = scmp.eq.s32.totalorder %s25, 0
    %p262 = por %p260, %p261
    %s264 = sadd.s32 %s263, 1
    %p267 = scmp.eq.s32.totalorder %s19, 1
    %p268 = scmp.ne.s32.totalorder %s263, %s265
    %p269 = scmp.eq.s32.totalorder %s19, 0
    %p270 = por %p268, %p269
    %p271 = scmp.ne.s32.totalorder %s263, %s265
    %p272 = scmp.eq.s32.totalorder %s24, 1
    %p273 = por %p271, %p272
    %p274 = scmp.ne.s32.totalorder %s265, %s266
    %p275 = scmp.eq.s32.totalorder %s24, 0
    %p276 = por %p274, %p275
    %p277 = scmp.ne.s32.totalorder %s265, %s266
    %p278 = scmp.eq.s32.totalorder %s25, 1
    %p279 = por %p277, %p278
    %p281 = scmp.ne.s32.totalorder %s266, %s280
    %p282 = scmp.eq.s32.totalorder %s25, 0
    %p283 = por %p281, %p282
    %s285 = sadd.s32 %s284, 1
    %p288 = scmp.eq.s32.totalorder %s19, 1
    %p289 = scmp.ne.s32.totalorder %s284, %s286
    %p290 = scmp.eq.s32.totalorder %s19, 0
    %p291 = por %p289, %p290
    %p292 = scmp.ne.s32.totalorder %s284, %s286
    %p293 = scmp.eq.s32.totalorder %s24, 1
    %p294 = por %p292, %p293
    %p295 = scmp.ne.s32.totalorder %s286, %s287
    %p296 = scmp.eq.s32.totalorder %s24, 0
    %p297 = por %p295, %p296
    %p298 = scmp.ne.s32.totalorder %s286, %s287
    %p299 = scmp.eq.s32.totalorder %s25, 1
    %p300 = por %p298, %p299
    %p302 = scmp.ne.s32.totalorder %s287, %s301
    %p303 = scmp.eq.s32.totalorder %s25, 0
    %p304 = por %p302, %p303
    %s305 = ssub.s32 %s19, %s26
    %p306 = scmp.eq.s32.totalorder %s305, 0
    %s308 = sadd.s32 %s307, 1
    %s309 = scalar_select %p306, %s307, %s308
    %p312 = pneg %p306
    %p313 = scmp.eq.s32.totalorder %s19, 1
    %p314 = por %p312, %p313
    %p315 = scmp.ne.s32.totalorder %s307, %s310
    %p316 = scmp.eq.s32.totalorder %s19, 0
    %p317 = por %p315, %p316
    %p318 = scmp.ne.s32.totalorder %s307, %s310
    %p319 = scmp.eq.s32.totalorder %s24, 1
    %p320 = por %p318, %p319
    %p321 = scmp.ne.s32.totalorder %s310, %s311
    %p322 = scmp.eq.s32.totalorder %s24, 0
    %p323 = por %p321, %p322
    %p324 = scmp.ne.s32.totalorder %s310, %s311
    %p325 = scmp.eq.s32.totalorder %s25, 1
    %p326 = por %p324, %p325
    %p328 = scmp.ne.s32.totalorder %s311, %s327
    %p329 = scmp.eq.s32.totalorder %s25, 0
    %p330 = por %p328, %p329
    %p331 = scmp.le.s32.totalorder 1, %s19
    %p332 = scmp.lt.s32.totalorder %s19, 3
    %p333 = pnand %p331, %p332
    %p334 = pneg %p333
    // Predicated region
    $region9: #{msfe_forward.1} parent=5 // pred_check
      _
    $region10: #{msfe_forward.1} parent=5 // pred_check_branch
      %336 = sbr.rel (%p333) target = $region12
    $region11: #{msfe_forward.1} parent=5 // pred_region
      %s337 = ssub.s32 %s19, 1
      // Predicated region
      $region13: #{msfe_forward.1} parent=11 // pred_check
        %p338 = pneg %p66
      $region14: #{msfe_forward.1} parent=11 // pred_check_branch
        %340 = sbr.rel (%p338) target = $region16
      $region15: #{msfe_forward.1} parent=11 // pred_region
        _
      $region16: #{msfe_forward.1} parent=11 // pred_fallthru
        _
      // Predicated region
      $region17: #{msfe_forward.1} parent=11 // pred_check
        %p341 = pneg %p87
      $region18: #{msfe_forward.1} parent=11 // pred_check_branch
        %343 = sbr.rel (%p341) target = $region20
      $region19: #{msfe_forward.1} parent=11 // pred_region
        _
      $region20: #{msfe_forward.1} parent=11 // pred_fallthru
        _
      // Predicated region
      $region21: #{msfe_forward.1} parent=11 // pred_check
        %p344 = pneg %p108
      $region22: #{msfe_forward.1} parent=11 // pred_check_branch
        %346 = sbr.rel (%p344) target = $region24
      $region23: #{msfe_forward.1} parent=11 // pred_region
        _
      $region24: #{msfe_forward.1} parent=11 // pred_fallthru
        _
      // Predicated region
      $region25: #{msfe_forward.1} parent=11 // pred_check
        %p347 = pneg %p129
      $region26: #{msfe_forward.1} parent=11 // pred_check_branch
        %349 = sbr.rel (%p347) target = $region28
      $region27: #{msfe_forward.1} parent=11 // pred_region
        _
      $region28: #{msfe_forward.1} parent=11 // pred_fallthru
        _
      // Predicated region
      $region29: #{msfe_forward.1} parent=11 // pred_check
        %p350 = pneg %p150
      $region30: #{msfe_forward.1} parent=11 // pred_check_branch
        %352 = sbr.rel (%p350) target = $region32
      $region31: #{msfe_forward.1} parent=11 // pred_region
        _
      $region32: #{msfe_forward.1} parent=11 // pred_fallthru
        _
      // Predicated region
      $region33: #{msfe_forward.1} parent=11 // pred_check
        %p353 = pneg %p171
      $region34: #{msfe_forward.1} parent=11 // pred_check_branch
        %355 = sbr.rel (%p353) target = $region36
      $region35: #{msfe_forward.1} parent=11 // pred_region
        _
      $region36: #{msfe_forward.1} parent=11 // pred_fallthru
        _
      // Predicated region
      $region37: #{msfe_forward.1} parent=11 // pred_check
        %p356 = pneg %p192
      $region38: #{msfe_forward.1} parent=11 // pred_check_branch
        %358 = sbr.rel (%p356) target = $region40
      $region39: #{msfe_forward.1} parent=11 // pred_region
        _
      $region40: #{msfe_forward.1} parent=11 // pred_fallthru
        _
      // Predicated region
      $region41: #{msfe_forward.1} parent=11 // pred_check
        %p359 = pneg %p213
      $region42: #{msfe_forward.1} parent=11 // pred_check_branch
        %361 = sbr.rel (%p359) target = $region44
      $region43: #{msfe_forward.1} parent=11 // pred_region
        _
      $region44: #{msfe_forward.1} parent=11 // pred_fallthru
        _
      // Predicated region
      $region45: #{msfe_forward.1} parent=11 // pred_check
        %p362 = pneg %p234
      $region46: #{msfe_forward.1} parent=11 // pred_check_branch
        %364 = sbr.rel (%p362) target = $region48
      $region47: #{msfe_forward.1} parent=11 // pred_region
        _
      $region48: #{msfe_forward.1} parent=11 // pred_fallthru
        _
      // Predicated region
      $region49: #{msfe_forward.1} parent=11 // pred_check
        %p365 = pneg %p255
      $region50: #{msfe_forward.1} parent=11 // pred_check_branch
        %367 = sbr.rel (%p365) target = $region52
      $region51: #{msfe_forward.1} parent=11 // pred_region
        _
      $region52: #{msfe_forward.1} parent=11 // pred_fallthru
        _
      // Predicated region
      $region53: #{msfe_forward.1} parent=11 // pred_check
        %p368 = pneg %p276
      $region54: #{msfe_forward.1} parent=11 // pred_check_branch
        %370 = sbr.rel (%p368) target = $region56
      $region55: #{msfe_forward.1} parent=11 // pred_region
        _
      $region56: #{msfe_forward.1} parent=11 // pred_fallthru
        _
      // Predicated region
      $region57: #{msfe_forward.1} parent=11 // pred_check
        %p371 = pneg %p297
      $region58: #{msfe_forward.1} parent=11 // pred_check_branch
        %373 = sbr.rel (%p371) target = $region60
      $region59: #{msfe_forward.1} parent=11 // pred_region
        _
      $region60: #{msfe_forward.1} parent=11 // pred_fallthru
        _
    $region12: #{msfe_forward.1} parent=5 // pred_fallthru
      _
    %p374 = scmp.lt.s32.totalorder %s19, 2
    // Predicated region
    $region61: #{msfe_forward.1} parent=5 // pred_check
      %p375 = pneg %p374
    $region62: #{msfe_forward.1} parent=5 // pred_check_branch
      %377 = sbr.rel (%p375) target = $region64
    $region63: #{msfe_forward.1} parent=5 // pred_region
      // Predicated region
      $region65: #{msfe_forward.1} parent=63 // pred_check
        %p378 = pneg %p39
      $region66: #{msfe_forward.1} parent=63 // pred_check_branch
        %380 = sbr.rel (%p378) target = $region68
      $region67: #{msfe_forward.1} parent=63 // pred_region
        %p381 = scmp.lt.s32.totalorder %s19, 1
        %s382 = scalar_select %p381, %s19, 1
        %s383 = smul.addr %s382, 8
        %s384 = smul.addr %s383, 8
        %s385 = scalar_lea.vmem %s0, %s384
      $region68: #{msfe_forward.1} parent=63 // pred_fallthru
        _
    $region64: #{msfe_forward.1} parent=5 // pred_fallthru
      _
    %p386 = scmp.le.s32.totalorder 1, %s19
    %p387 = scmp.lt.s32.totalorder %s19, 3
    %p388 = pnand %p386, %p387
    %p389 = pneg %p388
    // Predicated region
    $region69: #{msfe_forward.1} parent=5 // pred_check
      _
    $region70: #{msfe_forward.1} parent=5 // pred_check_branch
      %391 = sbr.rel (%p388) target = $region72
    $region71: #{msfe_forward.1} parent=5 // pred_region
      %s392 = ssub.s32 %s19, 1
      %p393 = scmp.lt.s32.totalorder %s24, 1
      %s394 = scalar_select %p393, %s24, 1
      %s395 = smul.addr %s394, 8
      %s396 = smul.addr %s395, 8
      %s397 = scalar_lea.vmem %s0, %s396
      %p398 = pneg %p45
      %p399 = pneg %p42
      %p400 = pneg %p66
      %p401 = pneg %p63
      %p402 = pneg %p87
      %p403 = pneg %p84
      %p404 = pneg %p108
      %p405 = pneg %p105
      %p406 = pneg %p129
      %p407 = pneg %p126
      %p408 = pneg %p150
      %p409 = pneg %p147
      %p410 = pneg %p171
      %p411 = pneg %p168
      %p412 = pneg %p192
      %p413 = pneg %p189
      %p414 = pneg %p213
      %p415 = pneg %p210
      %p416 = pneg %p234
      %p417 = pneg %p231
      %p418 = pneg %p255
      %p419 = pneg %p252
      %p420 = pneg %p276
      %p421 = pneg %p273
      %p422 = pneg %p297
      %p423 = pneg %p294
      %p424 = pneg %p323
      %p425 = pneg %p320
      %p426 = scmp.lt.s32.totalorder %s24, 1
      %s427 = scalar_select %p426, %s24, 1
      %s428 = smul.addr %s427, 8
      %s429 = smul.addr %s428, 8
      %s430 = scalar_lea.vmem %s13, %s429
      %p431 = scmp.lt.s32.totalorder %s24, 1
      %s432 = scalar_select %p431, %s24, 1
      %s433 = smul.addr %s432, 8
      %s434 = smul.addr %s433, 8
      %s435 = scalar_lea.vmem %s0, %s434
      %p436 = scmp.lt.s32.totalorder %s24, 1
      %s437 = scalar_select %p436, %s24, 1
      %s438 = smul.addr %s437, 8
      %s439 = smul.addr %s438, 8
      %s440 = scalar_lea.vmem %s13, %s439
      %v442 = vld [vmem:[%s435] sm:$0xff]
      %v443 = vld [vmem:[%s435 + $0x8] sm:$0xff]
      %v444 = vld [vmem:[%s435 + $0x10] sm:$0xff]
      %v445 = vld [vmem:[%s435 + $0x18] sm:$0xff]
      %v446 = vld [vmem:[%s435 + $0x20] sm:$0xff]
      %v447 = vld [vmem:[%s435 + $0x28] sm:$0xff]
      %v448 = vld [vmem:[%s435 + $0x30] sm:$0xff]
      %v449 = vld [vmem:[%s435 + $0x38] sm:$0xff]
      %v450 = vld [vmem:[%s12] sm:$0xff]
      %v451 = vld [vmem:[%s12 + $0x8] sm:$0xff]
      %v452 = vld [vmem:[%s12 + $0x10] sm:$0x1]
      %v453 = vld [vmem:[%s12 + $0x18] sm:$0x1]
      %v454 = vadd.f32 %v442, %v443
      %455 = vadd.xlane.f32.xlu0 %v454
      %v456 = vpop.xlane.xlu0 %455
      %v457 = vadd.f32 %v444, %v445
      %458 = vadd.xlane.f32.xlu0 %v457
      %v459 = vpop.xlane.xlu0 %458
      %v460 = vadd.f32 %v446, %v447
      %461 = vadd.xlane.f32.xlu0 %v460
      %v462 = vpop.xlane.xlu0 %461
      %v463 = vadd.f32 %v448, %v449
      %464 = vadd.xlane.f32.xlu0 %v463
      %v465 = vpop.xlane.xlu0 %464
      %v466 = vmul.f32 %v456, 0.00390625
      %v467 = vmul.f32 %v459, 0.00390625
      %v468 = vmul.f32 %v462, 0.00390625
      %v469 = vmul.f32 %v465, 0.00390625
      %v470 = vld [vmem:[%s1] sm:$0xff]
      %v471 = vld [vmem:[%s1 + $0x8] sm:$0xff]
      %v472 = vld [vmem:[%s1 + $0x10] sm:$0xff]
      %v473 = vld [vmem:[%s1 + $0x18] sm:$0xff]
      %vm474 = vcmask 261120
      %v476 = vsel %vm474, %v470, 0
      %v479 = vsel %vm474, %v471, 0
      %v482 = vsel %vm474, %v472, 0
      %v485 = vsel %vm474, %v473, 0
      %487 = vmatprep.subr.mxu0 0.0
      %488 = vmatpush1.msra.mxu0 %v466
      %489 = vmatprep.subr.mxu0 0.0
      %490 = vmatpush1.msra.mxu0 %v467
      %491 = vmatprep.subr.mxu0 0.0
      %492 = vmatpush1.msra.mxu0 %v468
      %493 = vmatprep.subr.mxu0 0.0
      %494 = vmatpush1.msra.mxu0 %v469
      %495 = vmatprep.subr.mxu0 0.0
      %496 = vmatpush1.msra.mxu0 0.0
      %497 = vmatprep.subr.mxu0 0.0
      %498 = vmatpush1.msra.mxu0 0.0
      %499 = vmatprep.subr.mxu0 0.0
      %500 = vmatpush1.msra.mxu0 0.0
      %501 = vmatprep.subr.mxu0 0.0
      %502 = vmatpush1.msra.mxu0 0.0
      %503 = vmatprep.subr.mxu0 0.0
      %504 = vmatpush1.msra.mxu0 0.0
      %505 = vmatprep.subr.mxu0 0.0
      %506 = vmatpush1.msra.mxu0 0.0
      %507 = vmatprep.subr.mxu0 0.0
      %508 = vmatpush1.msra.mxu0 0.0
      %509 = vmatprep.subr.mxu0 0.0
      %510 = vmatpush1.msra.mxu0 0.0
      %511 = vmatprep.subr.mxu0 0.0
      %512 = vmatpush1.msra.mxu0 0.0
      %513 = vmatprep.subr.mxu0 0.0
      %514 = vmatpush1.msra.mxu0 0.0
      %515 = vmatprep.subr.mxu0 0.0
      %516 = vmatpush1.msra.mxu0 0.0
      %517 = vmatprep.subr.mxu0 0.0
      %518 = vmatpush1.msra.mxu0 0.0
      %519 = vmatprep.subr.mxu0 0.0
      %520 = vmatpush1.msra.mxu0 0.0
      %521 = vmatprep.subr.mxu0 0.0
      %522 = vmatpush1.msra.mxu0 0.0
      %523 = vmatprep.subr.mxu0 0.0
      %524 = vmatpush1.msra.mxu0 0.0
      %525 = vmatprep.subr.mxu0 0.0
      %526 = vmatpush1.msra.mxu0 0.0
      %527 = vmatprep.subr.mxu0 0.0
      %528 = vmatpush1.msra.mxu0 0.0
      %529 = vmatprep.subr.mxu0 0.0
      %530 = vmatpush1.msra.mxu0 0.0
      %531 = vmatprep.subr.mxu0 0.0
      %532 = vmatpush1.msra.mxu0 0.0
      %533 = vmatprep.subr.mxu0 0.0
      %534 = vmatpush1.msra.mxu0 0.0
      %535 = vmatprep.subr.mxu0 0.0
      %536 = vmatpush1.msra.mxu0 0.0
      %537 = vmatprep.subr.mxu0 0.0
      %538 = vmatpush1.msra.mxu0 0.0
      %539 = vmatprep.subr.mxu0 0.0
      %540 = vmatpush1.msra.mxu0 0.0
      %541 = vmatprep.subr.mxu0 0.0
      %542 = vmatpush1.msra.mxu0 0.0
      %543 = vmatprep.subr.mxu0 0.0
      %544 = vmatpush1.msra.mxu0 0.0
      %545 = vmatprep.subr.mxu0 0.0
      %546 = vmatpush1.msra.mxu0 0.0
      %547 = vmatprep.subr.mxu0 0.0
      %548 = vmatpush1.msra.mxu0 0.0
      %549 = vmatprep.subr.mxu0 0.0
      %550 = vmatpush1.msra.mxu0 0.0
      %551 = vmatprep.mubr.f32.mxu0 0.0
      %552 = vmatmul.mubr.f32.gmra.mrb[0].mxu0 %v476
      %v553 = vpop.f32.mrb[0].mxu0
      %v554 = vadd.f32 0.0, %v553
      %v555 = vpop.f32.mrb[0].mxu0
      %556 = vmatprep.mubr.f32.mxu0 0.0
      %557 = vmatmul.mubr.f32.gmra.mrb[0].mxu0 %v479
      %v558 = vpop.f32.mrb[0].mxu0
      %v559 = vadd.f32 0.0, %v558
      %v560 = vpop.f32.mrb[0].mxu0
      %561 = vmatprep.mubr.f32.mxu0 0.0
      %562 = vmatmul.mubr.f32.gmra.mrb[0].mxu0 %v482
      %v563 = vpop.f32.mrb[0].mxu0
      %v564 = vadd.f32 0.0, %v563
      %v565 = vpop.f32.mrb[0].mxu0
      %566 = vmatprep.mubr.f32.mxu0 0.0
      %567 = vmatmul.mubr.f32.gmra.mrb[0].mxu0 %v485
      %v568 = vpop.f32.mrb[0].mxu0
      %v569 = vadd.f32 0.0, %v568
      %v570 = vpop.f32.mrb[0].mxu0
      %571 = vdwg.mxu0
      %v572 = vsub.f32 0.0, %v554
      %v573 = vsub.f32 0.0, %v559
      %v574 = vsub.f32 0.0, %v564
      %v575 = vsub.f32 0.0, %v569
      %v576 = vmul.f32 %v572, 1.442695
      %v577 = vpow.pop %v576
      %v578 = vmul.f32 %v573, 1.442695
      %v579 = vpow.pop %v578
      %v580 = vmul.f32 %v574, 1.442695
      %v581 = vpow.pop %v580
      %v582 = vmul.f32 %v575, 1.442695
      %v583 = vpow.pop %v582
      %v584 = vadd.f32 %v577, 1.0
      %v585 = vadd.f32 %v579, 1.0
      %v586 = vadd.f32 %v581, 1.0
      %v587 = vadd.f32 %v583, 1.0
      %v588 = vrcp.pop %v584
      %v589 = vrcp.pop %v585
      %v590 = vrcp.pop %v586
      %v591 = vrcp.pop %v587
      %593 = vset.pattern.permute.xlu0 0
      %594 = vperm.xlu0 %593, %v588
      %v595 = vpop.permute.xlu0 %594
      %598 = vset.pattern.permute.xlu0 0
      %599 = vperm.xlu0 %598, %v589
      %v600 = vpop.permute.xlu0 %599
      %603 = vset.pattern.permute.xlu0 0
      %604 = vperm.xlu0 %603, %v590
      %v605 = vpop.permute.xlu0 %604
      %608 = vset.pattern.permute.xlu0 0
      %609 = vperm.xlu0 %608, %v591
      %v610 = vpop.permute.xlu0 %609
      %v612 = vmul.f32 %v442, %v595
      %v613 = vmul.f32 %v443, %v595
      %v614 = vmul.f32 %v444, %v600
      %v615 = vmul.f32 %v445, %v600
      %v616 = vmul.f32 %v446, %v605
      %v617 = vmul.f32 %v447, %v605
      %v618 = vmul.f32 %v448, %v610
      %v619 = vmul.f32 %v449, %v610
      %620 = vrot.lane.b32.xlu0 %v612, 32
      %v621 = vpop.permute.xlu0 %620
      %622 = vrot.lane.b32.xlu0 %v614, 32
      %v623 = vpop.permute.xlu0 %622
      %624 = vrot.lane.b32.xlu0 %v616, 32
      %v625 = vpop.permute.xlu0 %624
      %626 = vrot.lane.b32.xlu0 %v618, 32
      %v627 = vpop.permute.xlu0 %626
      %628 = vrot.lane.b32.xlu0 %v613, 32
      %v629 = vpop.permute.xlu0 %628
      %630 = vrot.lane.b32.xlu0 %v615, 32
      %v631 = vpop.permute.xlu0 %630
      %632 = vrot.lane.b32.xlu0 %v617, 32
      %v633 = vpop.permute.xlu0 %632
      %634 = vrot.lane.b32.xlu0 %v619, 32
      %v635 = vpop.permute.xlu0 %634
      %v636 = vlaneseq
      %v637 = vand.u32 %v636, 127
      %vm638 = vcmp.lt.s32.totalorder %v637, 32
      %v639 = vsel %vm638, %v621, %v629
      %v640 = vsel %vm638, %v623, %v631
      %v641 = vsel %vm638, %v625, %v633
      %v642 = vsel %vm638, %v627, %v635
      %v643 = vsel %vm638, %v629, %v621
      %v644 = vsel %vm638, %v631, %v623
      %v645 = vsel %vm638, %v633, %v625
      %v646 = vsel %vm638, %v635, %v627
      %v647 = vlaneseq
      %v648 = vshrl.u32 %v647, 7
      %v649 = vsub.s32 6, %v648
      %v650 = vrot.slane %v450, %v649
      %v651 = vlaneseq
      %v652 = vshrl.u32 %v651, 7
      %v653 = vsub.s32 6, %v652
      %v654 = vrot.slane %v451, %v653
      %v655 = vmul.f32 %v643, %v650
      %v656 = vmul.f32 %v639, %v654
      %v657 = vmul.f32 %v644, %v650
      %v658 = vmul.f32 %v640, %v654
      %v659 = vmul.f32 %v645, %v650
      %v660 = vmul.f32 %v641, %v654
      %v661 = vmul.f32 %v646, %v650
      %v662 = vmul.f32 %v642, %v654
      %663 = vrot.lane.b32.xlu0 %v612, 16
      %v664 = vpop.permute.xlu0 %663
      %665 = vrot.lane.b32.xlu0 %v614, 16
      %v666 = vpop.permute.xlu0 %665
      %667 = vrot.lane.b32.xlu0 %v616, 16
      %v668 = vpop.permute.xlu0 %667
      %669 = vrot.lane.b32.xlu0 %v618, 16
      %v670 = vpop.permute.xlu0 %669
      %671 = vrot.lane.b32.xlu0 %v613, 16
      %v672 = vpop.permute.xlu0 %671
      %673 = vrot.lane.b32.xlu0 %v615, 16
      %v674 = vpop.permute.xlu0 %673
      %675 = vrot.lane.b32.xlu0 %v617, 16
      %v676 = vpop.permute.xlu0 %675
      %677 = vrot.lane.b32.xlu0 %v619, 16
      %v678 = vpop.permute.xlu0 %677
      %vm679 = vcmp.lt.s32.totalorder %v637, 16
      %v680 = vsel %vm679, %v664, %v672
      %v681 = vsel %vm679, %v666, %v674
      %v682 = vsel %vm679, %v668, %v676
      %v683 = vsel %vm679, %v670, %v678
      %v684 = vsel %vm679, %v672, %v664
      %v685 = vsel %vm679, %v674, %v666
      %v686 = vsel %vm679, %v676, %v668
      %v687 = vsel %vm679, %v678, %v670
      %v688 = vlaneseq
      %v689 = vshrl.u32 %v688, 7
      %v690 = vsub.s32 5, %v689
      %v691 = vrot.slane %v450, %v690
      %v692 = vlaneseq
      %v693 = vshrl.u32 %v692, 7
      %v694 = vsub.s32 5, %v693
      %v695 = vrot.slane %v451, %v694
      %v696 = vmul.f32 %v684, %v691
      %v697 = vmul.f32 %v680, %v695
      %v698 = vmul.f32 %v685, %v691
      %v699 = vmul.f32 %v681, %v695
      %v700 = vmul.f32 %v686, %v691
      %v701 = vmul.f32 %v682, %v695
      %v702 = vmul.f32 %v687, %v691
      %v703 = vmul.f32 %v683, %v695
      %704 = vrot.lane.b32.xlu0 %v612, 112
      %v705 = vpop.permute.xlu0 %704
      %706 = vrot.lane.b32.xlu0 %v614, 112
      %v707 = vpop.permute.xlu0 %706
      %708 = vrot.lane.b32.xlu0 %v616, 112
      %v709 = vpop.permute.xlu0 %708
      %710 = vrot.lane.b32.xlu0 %v618, 112
      %v711 = vpop.permute.xlu0 %710
      %712 = vrot.lane.b32.xlu0 %v613, 112
      %v713 = vpop.permute.xlu0 %712
      %714 = vrot.lane.b32.xlu0 %v615, 112
      %v715 = vpop.permute.xlu0 %714
      %716 = vrot.lane.b32.xlu0 %v617, 112
      %v717 = vpop.permute.xlu0 %716
      %718 = vrot.lane.b32.xlu0 %v619, 112
      %v719 = vpop.permute.xlu0 %718
      %vm720 = vcmp.lt.s32.totalorder %v637, 112
      %v721 = vsel %vm720, %v705, %v713
      %v722 = vsel %vm720, %v707, %v715
      %v723 = vsel %vm720, %v709, %v717
      %v724 = vsel %vm720, %v711, %v719
      %v725 = vsel %vm720, %v713, %v705
      %v726 = vsel %vm720, %v715, %v707
      %v727 = vsel %vm720, %v717, %v709
      %v728 = vsel %vm720, %v719, %v711
      %v729 = vlaneseq
      %v730 = vshrl.u32 %v729, 7
      %v731 = vsub.s32 7, %v730
      %v732 = vrot.slane %v450, %v731
      %v733 = vlaneseq
      %v734 = vshrl.u32 %v733, 7
      %v735 = vsub.s32 7, %v734
      %v736 = vrot.slane %v451, %v735
      %v737 = vmul.f32 %v721, %v732
      %v738 = vmul.f32 %v725, %v736
      %v739 = vmul.f32 %v722, %v732
      %v740 = vmul.f32 %v726, %v736
      %v741 = vmul.f32 %v723, %v732
      %v742 = vmul.f32 %v727, %v736
      %v743 = vmul.f32 %v724, %v732
      %v744 = vmul.f32 %v728, %v736
      %745 = vrot.lane.b32.xlu0 %v612, 96
      %v746 = vpop.permute.xlu0 %745
      %747 = vrot.lane.b32.xlu0 %v614, 96
      %v748 = vpop.permute.xlu0 %747
      %749 = vrot.lane.b32.xlu0 %v616, 96
      %v750 = vpop.permute.xlu0 %749
      %751 = vrot.lane.b32.xlu0 %v618, 96
      %v752 = vpop.permute.xlu0 %751
      %753 = vrot.lane.b32.xlu0 %v613, 96
      %v754 = vpop.permute.xlu0 %753
      %755 = vrot.lane.b32.xlu0 %v615, 96
      %v756 = vpop.permute.xlu0 %755
      %757 = vrot.lane.b32.xlu0 %v617, 96
      %v758 = vpop.permute.xlu0 %757
      %759 = vrot.lane.b32.xlu0 %v619, 96
      %v760 = vpop.permute.xlu0 %759
      %vm761 = vcmp.lt.s32.totalorder %v637, 96
      %v762 = vsel %vm761, %v746, %v754
      %v763 = vsel %vm761, %v748, %v756
      %v764 = vsel %vm761, %v750, %v758
      %v765 = vsel %vm761, %v752, %v760
      %v766 = vsel %vm761, %v754, %v746
      %v767 = vsel %vm761, %v756, %v748
      %v768 = vsel %vm761, %v758, %v750
      %v769 = vsel %vm761, %v760, %v752
      %v770 = vlaneseq
      %v771 = vshrl.u32 %v770, 7
      %v772 = vsub.s32 0, %v771
      %v773 = vrot.slane %v452, %v772
      %v774 = vlaneseq
      %v775 = vshrl.u32 %v774, 7
      %v776 = vsub.s32 0, %v775
      %v777 = vrot.slane %v453, %v776
      %v778 = vmul.f32 %v762, %v773
      %v779 = vmul.f32 %v766, %v777
      %v780 = vmul.f32 %v763, %v773
      %v781 = vmul.f32 %v767, %v777
      %v782 = vmul.f32 %v764, %v773
      %v783 = vmul.f32 %v768, %v777
      %v784 = vmul.f32 %v765, %v773
      %v785 = vmul.f32 %v769, %v777
      %v786 = vld [vmem:[%s2] sm:$0xff]
      %v787 = vld [vmem:[%s2 + $0x8] sm:$0xff]
      %v788 = vld [vmem:[%s2 + $0x10] sm:$0xff]
      %v789 = vld [vmem:[%s2 + $0x18] sm:$0xff]
      %v790 = vpack.c.bf16 %v657, %v655
      %v791 = vpack.c.bf16 %v658, %v656
      %v792 = vpack.c.bf16 %v661, %v659
      %v793 = vpack.c.bf16 %v662, %v660
      %v794 = vpack.c.bf16 %v698, %v696
      %v795 = vpack.c.bf16 %v699, %v697
      %v796 = vpack.c.bf16 %v702, %v700
      %v797 = vpack.c.bf16 %v703, %v701
      %v798 = vpack.c.bf16 %v614, %v612
      %v799 = vpack.c.bf16 %v615, %v613
      %v800 = vpack.c.bf16 %v618, %v616
      %v801 = vpack.c.bf16 %v619, %v617
      %v802 = vpack.c.bf16 %v739, %v737
      %v803 = vpack.c.bf16 %v740, %v738
      %v804 = vpack.c.bf16 %v743, %v741
      %v805 = vpack.c.bf16 %v744, %v742
      %v806 = vpack.c.bf16 %v780, %v778
      %v807 = vpack.c.bf16 %v781, %v779
      %v808 = vpack.c.bf16 %v784, %v782
      %v809 = vpack.c.bf16 %v785, %v783
      %v810 = vld [vmem:[%s3] sm:$0xff]
      %v811 = vld [vmem:[%s3 + $0x8] sm:$0xff]
      %v812 = vld [vmem:[%s3 + $0x10] sm:$0xff]
      %v813 = vld [vmem:[%s3 + $0x18] sm:$0xff]
      %815 = vset.pattern.permute.xlu0 0
      %816 = vperm.xlu0 %815, %v810
      %v817 = vpop.permute.xlu0 %816
      %820 = vset.pattern.permute.xlu0 0
      %821 = vperm.xlu0 %820, %v811
      %v822 = vpop.permute.xlu0 %821
      %825 = vset.pattern.permute.xlu0 0
      %826 = vperm.xlu0 %825, %v812
      %v827 = vpop.permute.xlu0 %826
      %830 = vset.pattern.permute.xlu0 0
      %831 = vperm.xlu0 %830, %v813
      %v832 = vpop.permute.xlu0 %831
      %v838 = vunpack.c.l.b16 %v786
      %v839 = vunpack.c.h.b16 %v786
      %v840 = vunpack.c.l.b16 %v787
      %v841 = vunpack.c.h.b16 %v787
      %v842 = vunpack.c.l.b16 %v788
      %v843 = vunpack.c.h.b16 %v788
      %v844 = vunpack.c.l.b16 %v789
      %v845 = vunpack.c.h.b16 %v789
      %v846 = vpack.c.b16 %v840, %v838
      %v847 = vpack.c.b16 %v841, %v839
      %v848 = vpack.c.b16 %v844, %v842
      %v849 = vpack.c.b16 %v845, %v843
      %v853 = vsel %vm474, %v847, 0
      %v856 = vsel %vm474, %v849, 0
      %858 = vmatprep.subr.bf16.mxu0 %v791
      %859 = vmatpush1.bf16.msra.mxu0 %v790
      %860 = vmatprep.subr.bf16.mxu0 %v793
      %861 = vmatpush1.bf16.msra.mxu0 %v792
      %862 = vmatprep.subr.bf16.mxu0 %v795
      %863 = vmatpush1.bf16.msra.mxu0 %v794
      %864 = vmatprep.subr.bf16.mxu0 %v797
      %865 = vmatpush1.bf16.msra.mxu0 %v796
      %866 = vmatprep.subr.bf16.mxu0 %v799
      %867 = vmatpush1.bf16.msra.mxu0 %v798
      %868 = vmatprep.subr.bf16.mxu0 %v801
      %869 = vmatpush1.bf16.msra.mxu0 %v800
      %870 = vmatprep.subr.bf16.mxu0 %v803
      %871 = vmatpush1.bf16.msra.mxu0 %v802
      %872 = vmatprep.subr.bf16.mxu0 %v805
      %873 = vmatpush1.bf16.msra.mxu0 %v804
      %874 = vmatprep.subr.bf16.mxu0 %v807
      %875 = vmatpush1.bf16.msra.mxu0 %v806
      %876 = vmatprep.subr.bf16.mxu0 %v809
      %877 = vmatpush1.bf16.msra.mxu0 %v808
      %878 = vmatprep.subr.bf16.mxu0 0
      %879 = vmatpush1.bf16.msra.mxu0 0
      %880 = vmatprep.subr.bf16.mxu0 0
      %881 = vmatpush1.bf16.msra.mxu0 0
      %882 = vmatprep.subr.bf16.mxu0 0
      %883 = vmatpush1.bf16.msra.mxu0 0
      %884 = vmatprep.subr.bf16.mxu0 0
      %885 = vmatpush1.bf16.msra.mxu0 0
      %886 = vmatprep.subr.bf16.mxu0 0
      %887 = vmatpush1.bf16.msra.mxu0 0
      %888 = vmatprep.subr.bf16.mxu0 0
      %889 = vmatpush1.bf16.msra.mxu0 0
      %890 = vmatprep.mubr.bf16.mxu0 %v853
      %891 = vmatmul.mubr.bf16.gmra.mrb[0].mxu0 %v846
      %v892 = vpop.f32.mrb[0].mxu0
      %v893 = vadd.f32 %v817, %v892
      %v894 = vpop.f32.mrb[0].mxu0
      %v895 = vadd.f32 %v817, %v894
      %v896 = vpop.f32.mrb[0].mxu0
      %v897 = vadd.f32 %v822, %v896
      %v898 = vpop.f32.mrb[0].mxu0
      %v899 = vadd.f32 %v822, %v898
      %900 = vmatprep.mubr.bf16.mxu0 %v856
      %901 = vmatmul.mubr.bf16.gmra.mrb[0].mxu0 %v848
      %v902 = vpop.f32.mrb[0].mxu0
      %v903 = vadd.f32 %v827, %v902
      %v904 = vpop.f32.mrb[0].mxu0
      %v905 = vadd.f32 %v827, %v904
      %v906 = vpop.f32.mrb[0].mxu0
      %v907 = vadd.f32 %v832, %v906
      %v908 = vpop.f32.mrb[0].mxu0
      %v909 = vadd.f32 %v832, %v908
      %910 = vdwg.mxu0
      %v911 = vsub.f32 0.0, %v893
      %v912 = vsub.f32 0.0, %v895
      %v913 = vsub.f32 0.0, %v897
      %v914 = vsub.f32 0.0, %v899
      %v915 = vsub.f32 0.0, %v903
      %v916 = vsub.f32 0.0, %v905
      %v917 = vsub.f32 0.0, %v907
      %v918 = vsub.f32 0.0, %v909
      %v919 = vmul.f32 %v911, 1.442695
      %v920 = vpow.pop %v919
      %v921 = vmul.f32 %v912, 1.442695
      %v922 = vpow.pop %v921
      %v923 = vmul.f32 %v913, 1.442695
      %v924 = vpow.pop %v923
      %v925 = vmul.f32 %v914, 1.442695
      %v926 = vpow.pop %v925
      %v927 = vmul.f32 %v915, 1.442695
      %v928 = vpow.pop %v927
      %v929 = vmul.f32 %v916, 1.442695
      %v930 = vpow.pop %v929
      %v931 = vmul.f32 %v917, 1.442695
      %v932 = vpow.pop %v931
      %v933 = vmul.f32 %v918, 1.442695
      %v934 = vpow.pop %v933
      %v935 = vadd.f32 %v920, 1.0
      %v936 = vadd.f32 %v922, 1.0
      %v937 = vadd.f32 %v924, 1.0
      %v938 = vadd.f32 %v926, 1.0
      %v939 = vadd.f32 %v928, 1.0
      %v940 = vadd.f32 %v930, 1.0
      %v941 = vadd.f32 %v932, 1.0
      %v942 = vadd.f32 %v934, 1.0
      %v943 = vrcp.pop %v935
      %v944 = vrcp.pop %v936
      %v945 = vrcp.pop %v937
      %v946 = vrcp.pop %v938
      %v947 = vrcp.pop %v939
      %v948 = vrcp.pop %v940
      %v949 = vrcp.pop %v941
      %v950 = vrcp.pop %v942
      %v951 = vmul.f32 %v893, %v943
      %v952 = vmul.f32 %v895, %v944
      %v953 = vmul.f32 %v897, %v945
      %v954 = vmul.f32 %v899, %v946
      %v955 = vmul.f32 %v903, %v947
      %v956 = vmul.f32 %v905, %v948
      %v957 = vmul.f32 %v907, %v949
      %v958 = vmul.f32 %v909, %v950
      %v959 = vadd.f32 %v612, %v696
      %v960 = vadd.f32 %v613, %v697
      %v961 = vadd.f32 %v614, %v698
      %v962 = vadd.f32 %v615, %v699
      %v963 = vadd.f32 %v616, %v700
      %v964 = vadd.f32 %v617, %v701
      %v965 = vadd.f32 %v618, %v702
      %v966 = vadd.f32 %v619, %v703
      %v967 = vadd.f32 %v959, %v737
      %v968 = vadd.f32 %v960, %v738
      %v969 = vadd.f32 %v961, %v739
      %v970 = vadd.f32 %v962, %v740
      %v971 = vadd.f32 %v963, %v741
      %v972 = vadd.f32 %v964, %v742
      %v973 = vadd.f32 %v965, %v743
      %v974 = vadd.f32 %v966, %v744
      %975 = vrot.lane.b32.xlu0 %v967, 1
      %v976 = vpop.permute.xlu0 %975
      %977 = vrot.lane.b32.xlu0 %v969, 1
      %v978 = vpop.permute.xlu0 %977
      %979 = vrot.lane.b32.xlu0 %v971, 1
      %v980 = vpop.permute.xlu0 %979
      %981 = vrot.lane.b32.xlu0 %v973, 1
      %v982 = vpop.permute.xlu0 %981
      %983 = vrot.lane.b32.xlu0 %v968, 1
      %v984 = vpop.permute.xlu0 %983
      %985 = vrot.lane.b32.xlu0 %v970, 1
      %v986 = vpop.permute.xlu0 %985
      %987 = vrot.lane.b32.xlu0 %v972, 1
      %v988 = vpop.permute.xlu0 %987
      %989 = vrot.lane.b32.xlu0 %v974, 1
      %v990 = vpop.permute.xlu0 %989
      %vm991 = vcmp.lt.s32.totalorder %v637, 1
      %v992 = vsel %vm991, %v976, %v984
      %v993 = vsel %vm991, %v978, %v986
      %v994 = vsel %vm991, %v980, %v988
      %v995 = vsel %vm991, %v982, %v990
      %v996 = vsel %vm991, %v984, %v976
      %v997 = vsel %vm991, %v986, %v978
      %v998 = vsel %vm991, %v988, %v980
      %v999 = vsel %vm991, %v990, %v982
      %v1000 = vlaneseq
      %v1001 = vshrl.u32 %v1000, 7
      %v1002 = vsub.s32 1, %v1001
      %v1003 = vrot.slane %v450, %v1002
      %v1004 = vlaneseq
      %v1005 = vshrl.u32 %v1004, 7
      %v1006 = vsub.s32 1, %v1005
      %v1007 = vrot.slane %v451, %v1006
      %v1008 = vmul.f32 %v996, %v1003
      %v1009 = vmul.f32 %v992, %v1007
      %v1010 = vmul.f32 %v997, %v1003
      %v1011 = vmul.f32 %v993, %v1007
      %v1012 = vmul.f32 %v998, %v1003
      %v1013 = vmul.f32 %v994, %v1007
      %v1014 = vmul.f32 %v999, %v1003
      %v1015 = vmul.f32 %v995, %v1007
      %v1016 = vadd.f32 %v967, %v1008
      %v1017 = vadd.f32 %v968, %v1009
      %v1018 = vadd.f32 %v969, %v1010
      %v1019 = vadd.f32 %v970, %v1011
      %v1020 = vadd.f32 %v971, %v1012
      %v1021 = vadd.f32 %v972, %v1013
      %v1022 = vadd.f32 %v973, %v1014
      %v1023 = vadd.f32 %v974, %v1015
      %1024 = vrot.lane.b32.xlu0 %v967, 127
      %v1025 = vpop.permute.xlu0 %1024
      %1026 = vrot.lane.b32.xlu0 %v969, 127
      %v1027 = vpop.permute.xlu0 %1026
      %1028 = vrot.lane.b32.xlu0 %v971, 127
      %v1029 = vpop.permute.xlu0 %1028
      %1030 = vrot.lane.b32.xlu0 %v973, 127
      %v1031 = vpop.permute.xlu0 %1030
      %1032 = vrot.lane.b32.xlu0 %v968, 127
      %v1033 = vpop.permute.xlu0 %1032
      %1034 = vrot.lane.b32.xlu0 %v970, 127
      %v1035 = vpop.permute.xlu0 %1034
      %1036 = vrot.lane.b32.xlu0 %v972, 127
      %v1037 = vpop.permute.xlu0 %1036
      %1038 = vrot.lane.b32.xlu0 %v974, 127
      %v1039 = vpop.permute.xlu0 %1038
      %vm1040 = vcmp.lt.s32.totalorder %v637, 127
      %v1041 = vsel %vm1040, %v1025, %v1033
      %v1042 = vsel %vm1040, %v1027, %v1035
      %v1043 = vsel %vm1040, %v1029, %v1037
      %v1044 = vsel %vm1040, %v1031, %v1039
      %v1045 = vsel %vm1040, %v1033, %v1025
      %v1046 = vsel %vm1040, %v1035, %v1027
      %v1047 = vsel %vm1040, %v1037, %v1029
      %v1048 = vsel %vm1040, %v1039, %v1031
      %v1049 = vlaneseq
      %v1050 = vshrl.u32 %v1049, 7
      %v1051 = vsub.s32 3, %v1050
      %v1052 = vrot.slane %v450, %v1051
      %v1053 = vlaneseq
      %v1054 = vshrl.u32 %v1053, 7
      %v1055 = vsub.s32 3, %v1054
      %v1056 = vrot.slane %v451, %v1055
      %v1057 = vmul.f32 %v1041, %v1052
      %v1058 = vmul.f32 %v1045, %v1056
      %v1059 = vmul.f32 %v1042, %v1052
      %v1060 = vmul.f32 %v1046, %v1056
      %v1061 = vmul.f32 %v1043, %v1052
      %v1062 = vmul.f32 %v1047, %v1056
      %v1063 = vmul.f32 %v1044, %v1052
      %v1064 = vmul.f32 %v1048, %v1056
      %v1065 = vadd.f32 %v1016, %v1057
      %v1066 = vadd.f32 %v1017, %v1058
      %v1067 = vadd.f32 %v1018, %v1059
      %v1068 = vadd.f32 %v1019, %v1060
      %v1069 = vadd.f32 %v1020, %v1061
      %v1070 = vadd.f32 %v1021, %v1062
      %v1071 = vadd.f32 %v1022, %v1063
      %v1072 = vadd.f32 %v1023, %v1064
      %v1073 = vmul.f32 %v1065, 0.11111111
      %v1074 = vmul.f32 %v1066, 0.11111111
      %v1075 = vmul.f32 %v1067, 0.11111111
      %v1076 = vmul.f32 %v1068, 0.11111111
      %v1077 = vmul.f32 %v1069, 0.11111111
      %v1078 = vmul.f32 %v1070, 0.11111111
      %v1079 = vmul.f32 %v1071, 0.11111111
      %v1080 = vmul.f32 %v1072, 0.11111111
      %1081 = vrot.lane.b32.xlu0 %v951, 2
      %v1082 = vpop.permute.xlu0 %1081
      %1083 = vrot.lane.b32.xlu0 %v953, 2
      %v1084 = vpop.permute.xlu0 %1083
      %1085 = vrot.lane.b32.xlu0 %v955, 2
      %v1086 = vpop.permute.xlu0 %1085
      %1087 = vrot.lane.b32.xlu0 %v952, 2
      %v1088 = vpop.permute.xlu0 %1087
      %1089 = vrot.lane.b32.xlu0 %v954, 2
      %v1090 = vpop.permute.xlu0 %1089
      %1091 = vrot.lane.b32.xlu0 %v956, 2
      %v1092 = vpop.permute.xlu0 %1091
      %vm1093 = vcmp.lt.s32.totalorder %v637, 2
      %v1094 = vsel %vm1093, %v1082, %v1088
      %v1095 = vsel %vm1093, %v1084, %v1090
      %v1096 = vsel %vm1093, %v1086, %v1092
      %v1097 = vsel %vm1093, %v1088, %v1082
      %v1098 = vsel %vm1093, %v1090, %v1084
      %v1099 = vsel %vm1093, %v1092, %v1086
      %v1100 = vlaneseq
      %v1101 = vshrl.u32 %v1100, 7
      %v1102 = vsub.s32 2, %v1101
      %v1103 = vrot.slane %v450, %v1102
      %v1104 = vlaneseq
      %v1105 = vshrl.u32 %v1104, 7
      %v1106 = vsub.s32 2, %v1105
      %v1107 = vrot.slane %v451, %v1106
      %v1108 = vmul.f32 %v1097, %v1103
      %v1109 = vmul.f32 %v1094, %v1107
      %v1110 = vmul.f32 %v1098, %v1103
      %v1111 = vmul.f32 %v1095, %v1107
      %v1112 = vmul.f32 %v1099, %v1103
      %v1113 = vmul.f32 %v1096, %v1107
      %1114 = vrot.lane.b32.xlu0 %v951, 1
      %v1115 = vpop.permute.xlu0 %1114
      %1116 = vrot.lane.b32.xlu0 %v953, 1
      %v1117 = vpop.permute.xlu0 %1116
      %1118 = vrot.lane.b32.xlu0 %v955, 1
      %v1119 = vpop.permute.xlu0 %1118
      %1120 = vrot.lane.b32.xlu0 %v952, 1
      %v1121 = vpop.permute.xlu0 %1120
      %1122 = vrot.lane.b32.xlu0 %v954, 1
      %v1123 = vpop.permute.xlu0 %1122
      %1124 = vrot.lane.b32.xlu0 %v956, 1
      %v1125 = vpop.permute.xlu0 %1124
      %v1126 = vsel %vm991, %v1115, %v1121
      %v1127 = vsel %vm991, %v1117, %v1123
      %v1128 = vsel %vm991, %v1119, %v1125
      %v1129 = vsel %vm991, %v1121, %v1115
      %v1130 = vsel %vm991, %v1123, %v1117
      %v1131 = vsel %vm991, %v1125, %v1119
      %v1132 = vmul.f32 %v1129, %v1003
      %v1133 = vmul.f32 %v1126, %v1007
      %v1134 = vmul.f32 %v1130, %v1003
      %v1135 = vmul.f32 %v1127, %v1007
      %v1136 = vmul.f32 %v1131, %v1003
      %v1137 = vmul.f32 %v1128, %v1007
      %1138 = vrot.lane.b32.xlu0 %v951, 127
      %v1139 = vpop.permute.xlu0 %1138
      %1140 = vrot.lane.b32.xlu0 %v953, 127
      %v1141 = vpop.permute.xlu0 %1140
      %1142 = vrot.lane.b32.xlu0 %v955, 127
      %v1143 = vpop.permute.xlu0 %1142
      %1144 = vrot.lane.b32.xlu0 %v952, 127
      %v1145 = vpop.permute.xlu0 %1144
      %1146 = vrot.lane.b32.xlu0 %v954, 127
      %v1147 = vpop.permute.xlu0 %1146
      %1148 = vrot.lane.b32.xlu0 %v956, 127
      %v1149 = vpop.permute.xlu0 %1148
      %v1150 = vsel %vm1040, %v1139, %v1145
      %v1151 = vsel %vm1040, %v1141, %v1147
      %v1152 = vsel %vm1040, %v1143, %v1149
      %v1153 = vsel %vm1040, %v1145, %v1139
      %v1154 = vsel %vm1040, %v1147, %v1141
      %v1155 = vsel %vm1040, %v1149, %v1143
      %v1156 = vmul.f32 %v1150, %v1052
      %v1157 = vmul.f32 %v1153, %v1056
      %v1158 = vmul.f32 %v1151, %v1052
      %v1159 = vmul.f32 %v1154, %v1056
      %v1160 = vmul.f32 %v1152, %v1052
      %v1161 = vmul.f32 %v1155, %v1056
      %1162 = vrot.lane.b32.xlu0 %v951, 126
      %v1163 = vpop.permute.xlu0 %1162
      %1164 = vrot.lane.b32.xlu0 %v953, 126
      %v1165 = vpop.permute.xlu0 %1164
      %1166 = vrot.lane.b32.xlu0 %v955, 126
      %v1167 = vpop.permute.xlu0 %1166
      %1168 = vrot.lane.b32.xlu0 %v952, 126
      %v1169 = vpop.permute.xlu0 %1168
      %1170 = vrot.lane.b32.xlu0 %v954, 126
      %v1171 = vpop.permute.xlu0 %1170
      %1172 = vrot.lane.b32.xlu0 %v956, 126
      %v1173 = vpop.permute.xlu0 %1172
      %vm1174 = vcmp.lt.s32.totalorder %v637, 126
      %v1175 = vsel %vm1174, %v1163, %v1169
      %v1176 = vsel %vm1174, %v1165, %v1171
      %v1177 = vsel %vm1174, %v1167, %v1173
      %v1178 = vsel %vm1174, %v1169, %v1163
      %v1179 = vsel %vm1174, %v1171, %v1165
      %v1180 = vsel %vm1174, %v1173, %v1167
      %v1181 = vlaneseq
      %v1182 = vshrl.u32 %v1181, 7
      %v1183 = vsub.s32 4, %v1182
      %v1184 = vrot.slane %v450, %v1183
      %v1185 = vlaneseq
      %v1186 = vshrl.u32 %v1185, 7
      %v1187 = vsub.s32 4, %v1186
      %v1188 = vrot.slane %v451, %v1187
      %v1189 = vmul.f32 %v1175, %v1184
      %v1190 = vmul.f32 %v1178, %v1188
      %v1191 = vmul.f32 %v1176, %v1184
      %v1192 = vmul.f32 %v1179, %v1188
      %v1193 = vmul.f32 %v1177, %v1184
      %v1194 = vmul.f32 %v1180, %v1188
      %v1195 = vld [vmem:[%s4] sm:$0xf]
      %v1196 = vld [vmem:[%s4 + $0x4] sm:$0xf]
      %v1197 = vld [vmem:[%s4 + $0x8] sm:$0xf]
      %v1198 = vpack.c.bf16 %v1110, %v1108
      %v1199 = vpack.c.bf16 %v1111, %v1109
      %v1200 = vpack.c.bf16 %v1132, %v1112
      %v1201 = vpack.c.bf16 %v1133, %v1113
      %v1202 = vpack.c.bf16 %v1136, %v1134
      %v1203 = vpack.c.bf16 %v1137, %v1135
      %v1204 = vpack.c.bf16 %v953, %v951
      %v1205 = vpack.c.bf16 %v954, %v952
      %v1206 = vpack.c.bf16 %v1156, %v955
      %v1207 = vpack.c.bf16 %v1157, %v956
      %v1208 = vpack.c.bf16 %v1160, %v1158
      %v1209 = vpack.c.bf16 %v1161, %v1159
      %v1210 = vpack.c.bf16 %v1191, %v1189
      %v1211 = vpack.c.bf16 %v1192, %v1190
      %v1212 = vpack.c.bf16 %v1193, %v1193
      %v1213 = vpack.c.bf16 %v1194, %v1194
      %v1214 = vld [vmem:[%s5] sm:$0xff]
      %v1215 = vld [vmem:[%s5 + $0x8] sm:$0xff]
      %v1216 = vld [vmem:[%s5 + $0x10] sm:$0xff]
      %1218 = vset.pattern.permute.xlu0 0
      %1219 = vperm.xlu0 %1218, %v1214
      %v1220 = vpop.permute.xlu0 %1219
      %1223 = vset.pattern.permute.xlu0 0
      %1224 = vperm.xlu0 %1223, %v1215
      %v1225 = vpop.permute.xlu0 %1224
      %1228 = vset.pattern.permute.xlu0 0
      %1229 = vperm.xlu0 %1228, %v1216
      %v1230 = vpop.permute.xlu0 %1229
      %v1235 = vunpack.c.l.b16 %v1195
      %v1236 = vunpack.c.l.b16 %v1196
      %v1237 = vunpack.c.l.b16 %v1197
      %v1238 = vpack.c.b16 %v1236, %v1235
      %v1239 = vpack.c.b16 %v1237, %v1237
      %vm1240 = vcmask 982016
      %v1242 = vsel %vm1240, %v1238, 0
      %v1245 = vsel %vm1240, %v1239, 0
      %vm1247 = vcmask 1043456
      %v1249 = vsel %vm1247, %v1212, 0
      %v1252 = vsel %vm1247, %v1213, 0
      %1254 = vmatprep.subr.bf16.mxu0 %v1199
      %1255 = vmatpush1.bf16.msra.mxu0 %v1198
      %1256 = vmatprep.subr.bf16.mxu0 %v1201
      %1257 = vmatpush1.bf16.msra.mxu0 %v1200
      %1258 = vmatprep.subr.bf16.mxu0 %v1203
      %1259 = vmatpush1.bf16.msra.mxu0 %v1202
      %1260 = vmatprep.subr.bf16.mxu0 %v1205
      %1261 = vmatpush1.bf16.msra.mxu0 %v1204
      %1262 = vmatprep.subr.bf16.mxu0 %v1207
      %1263 = vmatpush1.bf16.msra.mxu0 %v1206
      %1264 = vmatprep.subr.bf16.mxu0 %v1209
      %1265 = vmatpush1.bf16.msra.mxu0 %v1208
      %1266 = vmatprep.subr.bf16.mxu0 %v1211
      %1267 = vmatpush1.bf16.msra.mxu0 %v1210
      %1268 = vmatprep.subr.bf16.mxu0 %v1252
      %1269 = vmatpush1.bf16.msra.mxu0 %v1249
      %1270 = vmatprep.subr.bf16.mxu0 0
      %1271 = vmatpush1.bf16.msra.mxu0 0
      %1272 = vmatprep.subr.bf16.mxu0 0
      %1273 = vmatpush1.bf16.msra.mxu0 0
      %1274 = vmatprep.subr.bf16.mxu0 0
      %1275 = vmatpush1.bf16.msra.mxu0 0
      %1276 = vmatprep.subr.bf16.mxu0 0
      %1277 = vmatpush1.bf16.msra.mxu0 0
      %1278 = vmatprep.subr.bf16.mxu0 0
      %1279 = vmatpush1.bf16.msra.mxu0 0
      %1280 = vmatprep.subr.bf16.mxu0 0
      %1281 = vmatpush1.bf16.msra.mxu0 0
      %1282 = vmatprep.subr.bf16.mxu0 0
      %1283 = vmatpush1.bf16.msra.mxu0 0
      %1284 = vmatprep.subr.bf16.mxu0 0
      %1285 = vmatpush1.bf16.msra.mxu0 0
      %1286 = vmatprep.mubr.bf16.mxu0 0
      %1287 = vmatmul.mubr.bf16.gmra.mrb[0].mxu0 %v1242
      %v1288 = vpop.f32.mrb[0].mxu0
      %v1289 = vadd.f32 %v1220, %v1288
      %v1290 = vpop.f32.mrb[0].mxu0
      %v1291 = vadd.f32 %v1220, %v1290
      %v1292 = vpop.f32.mrb[0].mxu0
      %v1293 = vadd.f32 %v1225, %v1292
      %v1294 = vpop.f32.mrb[0].mxu0
      %v1295 = vadd.f32 %v1225, %v1294
      %1296 = vmatprep.mubr.bf16.mxu0 0
      %1297 = vmatmul.mubr.bf16.gmra.mrb[0].mxu0 %v1245
      %v1298 = vpop.f32.mrb[0].mxu0
      %v1299 = vadd.f32 %v1230, %v1298
      %v1300 = vpop.f32.mrb[0].mxu0
      %v1301 = vadd.f32 %v1230, %v1300
      %v1302 = vpop.f32.mrb[0].mxu0
      %v1303 = vpop.f32.mrb[0].mxu0
      %1304 = vdwg.mxu0
      %v1305 = vsub.f32 0.0, %v1289
      %v1306 = vsub.f32 0.0, %v1291
      %v1307 = vsub.f32 0.0, %v1293
      %v1308 = vsub.f32 0.0, %v1295
      %v1309 = vsub.f32 0.0, %v1299
      %v1310 = vsub.f32 0.0, %v1301
      %v1311 = vmul.f32 %v1305, 1.442695
      %v1312 = vpow.pop %v1311
      %v1313 = vmul.f32 %v1306, 1.442695
      %v1314 = vpow.pop %v1313
      %v1315 = vmul.f32 %v1307, 1.442695
      %v1316 = vpow.pop %v1315
      %v1317 = vmul.f32 %v1308, 1.442695
      %v1318 = vpow.pop %v1317
      %v1319 = vmul.f32 %v1309, 1.442695
      %v1320 = vpow.pop %v1319
      %v1321 = vmul.f32 %v1310, 1.442695
      %v1322 = vpow.pop %v1321
      %v1323 = vadd.f32 %v1312, 1.0
      %v1324 = vadd.f32 %v1314, 1.0
      %v1325 = vadd.f32 %v1316, 1.0
      %v1326 = vadd.f32 %v1318, 1.0
      %v1327 = vadd.f32 %v1320, 1.0
      %v1328 = vadd.f32 %v1322, 1.0
      %v1329 = vrcp.pop %v1323
      %v1330 = vrcp.pop %v1324
      %v1331 = vrcp.pop %v1325
      %v1332 = vrcp.pop %v1326
      %v1333 = vrcp.pop %v1327
      %v1334 = vrcp.pop %v1328
      %v1335 = vmul.f32 %v1289, %v1329
      %v1336 = vmul.f32 %v1291, %v1330
      %v1337 = vmul.f32 %v1293, %v1331
      %v1338 = vmul.f32 %v1295, %v1332
      %v1339 = vmul.f32 %v1299, %v1333
      %v1340 = vmul.f32 %v1301, %v1334
      %1341 = vrot.lane.b32.xlu0 %v1337, 32
      %v1342 = vpop.permute.xlu0 %1341
      %1343 = vrot.lane.b32.xlu0 %v1339, 32
      %v1344 = vpop.permute.xlu0 %1343
      %1345 = vrot.lane.b32.xlu0 %v1338, 32
      %v1346 = vpop.permute.xlu0 %1345
      %1347 = vrot.lane.b32.xlu0 %v1340, 32
      %v1348 = vpop.permute.xlu0 %1347
      %v1349 = vsel %vm638, %v1342, %v1346
      %v1350 = vsel %vm638, %v1344, %v1348
      %v1351 = vsel %vm638, %v1346, %v1342
      %v1352 = vsel %vm638, %v1348, %v1344
      %v1353 = vmul.f32 %v1351, %v650
      %v1354 = vmul.f32 %v1349, %v654
      %v1355 = vmul.f32 %v1352, %v650
      %v1356 = vmul.f32 %v1350, %v654
      %1357 = vrot.lane.b32.xlu0 %v1337, 16
      %v1358 = vpop.permute.xlu0 %1357
      %1359 = vrot.lane.b32.xlu0 %v1339, 16
      %v1360 = vpop.permute.xlu0 %1359
      %1361 = vrot.lane.b32.xlu0 %v1338, 16
      %v1362 = vpop.permute.xlu0 %1361
      %1363 = vrot.lane.b32.xlu0 %v1340, 16
      %v1364 = vpop.permute.xlu0 %1363
      %v1365 = vsel %vm679, %v1358, %v1362
      %v1366 = vsel %vm679, %v1360, %v1364
      %v1367 = vsel %vm679, %v1362, %v1358
      %v1368 = vsel %vm679, %v1364, %v1360
      %v1369 = vmul.f32 %v1367, %v691
      %v1370 = vmul.f32 %v1365, %v695
      %v1371 = vmul.f32 %v1368, %v691
      %v1372 = vmul.f32 %v1366, %v695
      %1373 = vrot.lane.b32.xlu0 %v1337, 112
      %v1374 = vpop.permute.xlu0 %1373
      %1375 = vrot.lane.b32.xlu0 %v1339, 112
      %v1376 = vpop.permute.xlu0 %1375
      %1377 = vrot.lane.b32.xlu0 %v1338, 112
      %v1378 = vpop.permute.xlu0 %1377
      %1379 = vrot.lane.b32.xlu0 %v1340, 112
      %v1380 = vpop.permute.xlu0 %1379
      %v1381 = vsel %vm720, %v1374, %v1378
      %v1382 = vsel %vm720, %v1376, %v1380
      %v1383 = vsel %vm720, %v1378, %v1374
      %v1384 = vsel %vm720, %v1380, %v1376
      %v1385 = vmul.f32 %v1381, %v732
      %v1386 = vmul.f32 %v1383, %v736
      %v1387 = vmul.f32 %v1382, %v732
      %v1388 = vmul.f32 %v1384, %v736
      %1389 = vrot.lane.b32.xlu0 %v1337, 96
      %v1390 = vpop.permute.xlu0 %1389
      %1391 = vrot.lane.b32.xlu0 %v1339, 96
      %v1392 = vpop.permute.xlu0 %1391
      %1393 = vrot.lane.b32.xlu0 %v1338, 96
      %v1394 = vpop.permute.xlu0 %1393
      %1395 = vrot.lane.b32.xlu0 %v1340, 96
      %v1396 = vpop.permute.xlu0 %1395
      %v1397 = vsel %vm761, %v1390, %v1394
      %v1398 = vsel %vm761, %v1392, %v1396
      %v1399 = vsel %vm761, %v1394, %v1390
      %v1400 = vsel %vm761, %v1396, %v1392
      %v1401 = vmul.f32 %v1397, %v773
      %v1402 = vmul.f32 %v1399, %v777
      %v1403 = vmul.f32 %v1398, %v773
      %v1404 = vmul.f32 %v1400, %v777
      %v1405 = vld [vmem:[%s6] sm:$0xf]
      %v1406 = vld [vmem:[%s6 + $0x4] sm:$0xf]
      %v1407 = vpack.c.bf16 %v1355, %v1353
      %v1408 = vpack.c.bf16 %v1356, %v1354
      %v1409 = vpack.c.bf16 %v1371, %v1369
      %v1410 = vpack.c.bf16 %v1372, %v1370
      %v1411 = vpack.c.bf16 %v1339, %v1337
      %v1412 = vpack.c.bf16 %v1340, %v1338
      %v1413 = vpack.c.bf16 %v1387, %v1385
      %v1414 = vpack.c.bf16 %v1388, %v1386
      %v1415 = vpack.c.bf16 %v1403, %v1401
      %v1416 = vpack.c.bf16 %v1404, %v1402
      %v1417 = vld [vmem:[%s7] sm:$0xff]
      %v1418 = vld [vmem:[%s7 + $0x8] sm:$0xff]
      %1420 = vset.pattern.permute.xlu0 0
      %1421 = vperm.xlu0 %1420, %v1417
      %v1422 = vpop.permute.xlu0 %1421
      %1425 = vset.pattern.permute.xlu0 0
      %1426 = vperm.xlu0 %1425, %v1418
      %v1427 = vpop.permute.xlu0 %1426
      %v1431 = vunpack.c.l.b16 %v1405
      %v1432 = vunpack.c.l.b16 %v1406
      %v1433 = vpack.c.b16 %v1432, %v1431
      %vm1434 = vcmask 654336
      %v1436 = vsel %vm1434, %v1433, 0
      %1438 = vmatprep.subr.bf16.mxu0 %v1408
      %1439 = vmatpush1.bf16.msra.mxu0 %v1407
      %1440 = vmatprep.subr.bf16.mxu0 %v1410
      %1441 = vmatpush1.bf16.msra.mxu0 %v1409
      %1442 = vmatprep.subr.bf16.mxu0 %v1412
      %1443 = vmatpush1.bf16.msra.mxu0 %v1411
      %1444 = vmatprep.subr.bf16.mxu0 %v1414
      %1445 = vmatpush1.bf16.msra.mxu0 %v1413
      %1446 = vmatprep.subr.bf16.mxu0 %v1416
      %1447 = vmatpush1.bf16.msra.mxu0 %v1415
      %1448 = vmatprep.subr.bf16.mxu0 0
      %1449 = vmatpush1.bf16.msra.mxu0 0
      %1450 = vmatprep.subr.bf16.mxu0 0
      %1451 = vmatpush1.bf16.msra.mxu0 0
      %1452 = vmatprep.subr.bf16.mxu0 0
      %1453 = vmatpush1.bf16.msra.mxu0 0
      %1454 = vmatprep.subr.bf16.mxu0 0
      %1455 = vmatpush1.bf16.msra.mxu0 0
      %1456 = vmatprep.subr.bf16.mxu0 0
      %1457 = vmatpush1.bf16.msra.mxu0 0
      %1458 = vmatprep.subr.bf16.mxu0 0
      %1459 = vmatpush1.bf16.msra.mxu0 0
      %1460 = vmatprep.subr.bf16.mxu0 0
      %1461 = vmatpush1.bf16.msra.mxu0 0
      %1462 = vmatprep.subr.bf16.mxu0 0
      %1463 = vmatpush1.bf16.msra.mxu0 0
      %1464 = vmatprep.subr.bf16.mxu0 0
      %1465 = vmatpush1.bf16.msra.mxu0 0
      %1466 = vmatprep.subr.bf16.mxu0 0
      %1467 = vmatpush1.bf16.msra.mxu0 0
      %1468 = vmatprep.subr.bf16.mxu0 0
      %1469 = vmatpush1.bf16.msra.mxu0 0
      %1470 = vmatprep.mubr.bf16.mxu0 0
      %1471 = vmatmul.mubr.bf16.gmra.mrb[0].mxu0 %v1436
      %v1472 = vpop.f32.mrb[0].mxu0
      %v1473 = vadd.f32 %v1422, %v1472
      %v1474 = vpop.f32.mrb[0].mxu0
      %v1475 = vadd.f32 %v1422, %v1474
      %v1476 = vpop.f32.mrb[0].mxu0
      %v1477 = vadd.f32 %v1427, %v1476
      %v1478 = vpop.f32.mrb[0].mxu0
      %v1479 = vadd.f32 %v1427, %v1478
      %1480 = vdwg.mxu0
      %v1481 = vsub.f32 0.0, %v1473
      %v1482 = vsub.f32 0.0, %v1475
      %v1483 = vsub.f32 0.0, %v1477
      %v1484 = vsub.f32 0.0, %v1479
      %v1485 = vmul.f32 %v1481, 1.442695
      %v1486 = vpow.pop %v1485
      %v1487 = vmul.f32 %v1482, 1.442695
      %v1488 = vpow.pop %v1487
      %v1489 = vmul.f32 %v1483, 1.442695
      %v1490 = vpow.pop %v1489
      %v1491 = vmul.f32 %v1484, 1.442695
      %v1492 = vpow.pop %v1491
      %v1493 = vadd.f32 %v1486, 1.0
      %v1494 = vadd.f32 %v1488, 1.0
      %v1495 = vadd.f32 %v1490, 1.0
      %v1496 = vadd.f32 %v1492, 1.0
      %v1497 = vrcp.pop %v1493
      %v1498 = vrcp.pop %v1494
      %v1499 = vrcp.pop %v1495
      %v1500 = vrcp.pop %v1496
      %v1501 = vmul.f32 %v1473, %v1497
      %v1502 = vmul.f32 %v1475, %v1498
      %v1503 = vmul.f32 %v1477, %v1499
      %v1504 = vmul.f32 %v1479, %v1500
      %1505 = vrot.lane.b32.xlu0 %v1501, 2
      %v1506 = vpop.permute.xlu0 %1505
      %1507 = vrot.lane.b32.xlu0 %v1503, 2
      %v1508 = vpop.permute.xlu0 %1507
      %1509 = vrot.lane.b32.xlu0 %v1502, 2
      %v1510 = vpop.permute.xlu0 %1509
      %1511 = vrot.lane.b32.xlu0 %v1504, 2
      %v1512 = vpop.permute.xlu0 %1511
      %v1513 = vsel %vm1093, %v1506, %v1510
      %v1514 = vsel %vm1093, %v1508, %v1512
      %v1515 = vsel %vm1093, %v1510, %v1506
      %v1516 = vsel %vm1093, %v1512, %v1508
      %v1517 = vmul.f32 %v1515, %v1103
      %v1518 = vmul.f32 %v1513, %v1107
      %v1519 = vmul.f32 %v1516, %v1103
      %v1520 = vmul.f32 %v1514, %v1107
      %1521 = vrot.lane.b32.xlu0 %v1501, 1
      %v1522 = vpop.permute.xlu0 %1521
      %1523 = vrot.lane.b32.xlu0 %v1503, 1
      %v1524 = vpop.permute.xlu0 %1523
      %1525 = vrot.lane.b32.xlu0 %v1502, 1
      %v1526 = vpop.permute.xlu0 %1525
      %1527 = vrot.lane.b32.xlu0 %v1504, 1
      %v1528 = vpop.permute.xlu0 %1527
      %v1529 = vsel %vm991, %v1522, %v1526
      %v1530 = vsel %vm991, %v1524, %v1528
      %v1531 = vsel %vm991, %v1526, %v1522
      %v1532 = vsel %vm991, %v1528, %v1524
      %v1533 = vmul.f32 %v1531, %v1003
      %v1534 = vmul.f32 %v1529, %v1007
      %v1535 = vmul.f32 %v1532, %v1003
      %v1536 = vmul.f32 %v1530, %v1007
      %1537 = vrot.lane.b32.xlu0 %v1501, 127
      %v1538 = vpop.permute.xlu0 %1537
      %1539 = vrot.lane.b32.xlu0 %v1503, 127
      %v1540 = vpop.permute.xlu0 %1539
      %1541 = vrot.lane.b32.xlu0 %v1502, 127
      %v1542 = vpop.permute.xlu0 %1541
      %1543 = vrot.lane.b32.xlu0 %v1504, 127
      %v1544 = vpop.permute.xlu0 %1543
      %v1545 = vsel %vm1040, %v1538, %v1542
      %v1546 = vsel %vm1040, %v1540, %v1544
      %v1547 = vsel %vm1040, %v1542, %v1538
      %v1548 = vsel %vm1040, %v1544, %v1540
      %v1549 = vmul.f32 %v1545, %v1052
      %v1550 = vmul.f32 %v1547, %v1056
      %v1551 = vmul.f32 %v1546, %v1052
      %v1552 = vmul.f32 %v1548, %v1056
      %1553 = vrot.lane.b32.xlu0 %v1501, 126
      %v1554 = vpop.permute.xlu0 %1553
      %1555 = vrot.lane.b32.xlu0 %v1503, 126
      %v1556 = vpop.permute.xlu0 %1555
      %1557 = vrot.lane.b32.xlu0 %v1502, 126
      %v1558 = vpop.permute.xlu0 %1557
      %1559 = vrot.lane.b32.xlu0 %v1504, 126
      %v1560 = vpop.permute.xlu0 %1559
      %v1561 = vsel %vm1174, %v1554, %v1558
      %v1562 = vsel %vm1174, %v1556, %v1560
      %v1563 = vsel %vm1174, %v1558, %v1554
      %v1564 = vsel %vm1174, %v1560, %v1556
      %v1565 = vmul.f32 %v1561, %v1184
      %v1566 = vmul.f32 %v1563, %v1188
      %v1567 = vmul.f32 %v1562, %v1184
      %v1568 = vmul.f32 %v1564, %v1188
      %v1569 = vld [vmem:[%s8] sm:$0xf]
      %v1570 = vld [vmem:[%s8 + $0x4] sm:$0xf]
      %v1571 = vpack.c.bf16 %v1519, %v1517
      %v1572 = vpack.c.bf16 %v1520, %v1518
      %v1573 = vpack.c.bf16 %v1535, %v1533
      %v1574 = vpack.c.bf16 %v1536, %v1534
      %v1575 = vpack.c.bf16 %v1503, %v1501
      %v1576 = vpack.c.bf16 %v1504, %v1502
      %v1577 = vpack.c.bf16 %v1551, %v1549
      %v1578 = vpack.c.bf16 %v1552, %v1550
      %v1579 = vpack.c.bf16 %v1567, %v1565
      %v1580 = vpack.c.bf16 %v1568, %v1566
      %v1581 = vld [vmem:[%s9] sm:$0xff]
      %v1582 = vld [vmem:[%s9 + $0x8] sm:$0xff]
      %1584 = vset.pattern.permute.xlu0 0
      %1585 = vperm.xlu0 %1584, %v1581
      %v1586 = vpop.permute.xlu0 %1585
      %1589 = vset.pattern.permute.xlu0 0
      %1590 = vperm.xlu0 %1589, %v1582
      %v1591 = vpop.permute.xlu0 %1590
      %v1595 = vunpack.c.l.b16 %v1569
      %v1596 = vunpack.c.l.b16 %v1570
      %v1597 = vpack.c.b16 %v1596, %v1595
      %v1599 = vsel %vm1434, %v1597, 0
      %1601 = vmatprep.subr.bf16.mxu0 %v1572
      %1602 = vmatpush1.bf16.msra.mxu0 %v1571
      %1603 = vmatprep.subr.bf16.mxu0 %v1574
      %1604 = vmatpush1.bf16.msra.mxu0 %v1573
      %1605 = vmatprep.subr.bf16.mxu0 %v1576
      %1606 = vmatpush1.bf16.msra.mxu0 %v1575
      %1607 = vmatprep.subr.bf16.mxu0 %v1578
      %1608 = vmatpush1.bf16.msra.mxu0 %v1577
      %1609 = vmatprep.subr.bf16.mxu0 %v1580
      %1610 = vmatpush1.bf16.msra.mxu0 %v1579
      %1611 = vmatprep.subr.bf16.mxu0 0
      %1612 = vmatpush1.bf16.msra.mxu0 0
      %1613 = vmatprep.subr.bf16.mxu0 0
      %1614 = vmatpush1.bf16.msra.mxu0 0
      %1615 = vmatprep.subr.bf16.mxu0 0
      %1616 = vmatpush1.bf16.msra.mxu0 0
      %1617 = vmatprep.subr.bf16.mxu0 0
      %1618 = vmatpush1.bf16.msra.mxu0 0
      %1619 = vmatprep.subr.bf16.mxu0 0
      %1620 = vmatpush1.bf16.msra.mxu0 0
      %1621 = vmatprep.subr.bf16.mxu0 0
      %1622 = vmatpush1.bf16.msra.mxu0 0
      %1623 = vmatprep.subr.bf16.mxu0 0
      %1624 = vmatpush1.bf16.msra.mxu0 0
      %1625 = vmatprep.subr.bf16.mxu0 0
      %1626 = vmatpush1.bf16.msra.mxu0 0
      %1627 = vmatprep.subr.bf16.mxu0 0
      %1628 = vmatpush1.bf16.msra.mxu0 0
      %1629 = vmatprep.subr.bf16.mxu0 0
      %1630 = vmatpush1.bf16.msra.mxu0 0
      %1631 = vmatprep.subr.bf16.mxu0 0
      %1632 = vmatpush1.bf16.msra.mxu0 0
      %1633 = vmatprep.mubr.bf16.mxu0 0
      %1634 = vmatmul.mubr.bf16.gmra.mrb[0].mxu0 %v1599
      %v1635 = vpop.f32.mrb[0].mxu0
      %v1636 = vadd.f32 %v1586, %v1635
      %v1637 = vpop.f32.mrb[0].mxu0
      %v1638 = vadd.f32 %v1586, %v1637
      %v1639 = vpop.f32.mrb[0].mxu0
      %v1640 = vadd.f32 %v1591, %v1639
      %v1641 = vpop.f32.mrb[0].mxu0
      %v1642 = vadd.f32 %v1591, %v1641
      %1643 = vdwg.mxu0
      %v1644 = vsub.f32 0.0, %v1636
      %v1645 = vsub.f32 0.0, %v1638
      %v1646 = vsub.f32 0.0, %v1640
      %v1647 = vsub.f32 0.0, %v1642
      %v1648 = vmul.f32 %v1644, 1.442695
      %v1649 = vpow.pop %v1648
      %v1650 = vmul.f32 %v1645, 1.442695
      %v1651 = vpow.pop %v1650
      %v1652 = vmul.f32 %v1646, 1.442695
      %v1653 = vpow.pop %v1652
      %v1654 = vmul.f32 %v1647, 1.442695
      %v1655 = vpow.pop %v1654
      %v1656 = vadd.f32 %v1649, 1.0
      %v1657 = vadd.f32 %v1651, 1.0
      %v1658 = vadd.f32 %v1653, 1.0
      %v1659 = vadd.f32 %v1655, 1.0
      %v1660 = vrcp.pop %v1656
      %v1661 = vrcp.pop %v1657
      %v1662 = vrcp.pop %v1658
      %v1663 = vrcp.pop %v1659
      %v1664 = vmul.f32 %v1636, %v1660
      %v1665 = vmul.f32 %v1638, %v1661
      %v1666 = vmul.f32 %v1640, %v1662
      %v1667 = vmul.f32 %v1642, %v1663
      %v1668 = vld [vmem:[%s10] sm:$0xf]
      %v1669 = vld [vmem:[%s10 + $0x4] sm:$0xf]
      %v1670 = vld [vmem:[%s10 + $0x8] sm:$0xf]
      %v1671 = vld [vmem:[%s10 + $0xc] sm:$0xf]
      %v1672 = vpack.c.bf16 %v1073, %v957
      %v1673 = vpack.c.bf16 %v1074, %v958
      %v1674 = vpack.c.bf16 %v1077, %v1075
      %v1675 = vpack.c.bf16 %v1078, %v1076
      %v1676 = vpack.c.bf16 %v1335, %v1079
      %v1677 = vpack.c.bf16 %v1336, %v1080
      %v1678 = vpack.c.bf16 %v1666, %v1664
      %v1679 = vpack.c.bf16 %v1667, %v1665
      %v1680 = vld [vmem:[%s11] sm:$0xff]
      %v1681 = vld [vmem:[%s11 + $0x8] sm:$0xff]
      %v1682 = vld [vmem:[%s11 + $0x10] sm:$0xff]
      %v1683 = vld [vmem:[%s11 + $0x18] sm:$0xff]
      %1685 = vset.pattern.permute.xlu0 0
      %1686 = vperm.xlu0 %1685, %v1680
      %v1687 = vpop.permute.xlu0 %1686
      %1690 = vset.pattern.permute.xlu0 0
      %1691 = vperm.xlu0 %1690, %v1681
      %v1692 = vpop.permute.xlu0 %1691
      %1695 = vset.pattern.permute.xlu0 0
      %1696 = vperm.xlu0 %1695, %v1682
      %v1697 = vpop.permute.xlu0 %1696
      %1700 = vset.pattern.permute.xlu0 0
      %1701 = vperm.xlu0 %1700, %v1683
      %v1702 = vpop.permute.xlu0 %1701
      %v1708 = vunpack.c.l.b16 %v1668
      %v1709 = vunpack.c.l.b16 %v1669
      %v1710 = vunpack.c.l.b16 %v1670
      %v1711 = vunpack.c.l.b16 %v1671
      %v1712 = vpack.c.b16 %v1709, %v1708
      %v1713 = vpack.c.b16 %v1711, %v1710
      %vm1714 = vcmask 523264
      %v1716 = vsel %vm1714, %v1712, 0
      %v1719 = vsel %vm1714, %v1713, 0
      %1721 = vmatprep.subr.bf16.mxu0 %v1673
      %1722 = vmatpush1.bf16.msra.mxu0 %v1672
      %1723 = vmatprep.subr.bf16.mxu0 %v1675
      %1724 = vmatpush1.bf16.msra.mxu0 %v1674
      %1725 = vmatprep.subr.bf16.mxu0 %v1677
      %1726 = vmatpush1.bf16.msra.mxu0 %v1676
      %1727 = vmatprep.subr.bf16.mxu0 %v1679
      %1728 = vmatpush1.bf16.msra.mxu0 %v1678
      %1729 = vmatprep.subr.bf16.mxu0 0
      %1730 = vmatpush1.bf16.msra.mxu0 0
      %1731 = vmatprep.subr.bf16.mxu0 0
      %1732 = vmatpush1.bf16.msra.mxu0 0
      %1733 = vmatprep.subr.bf16.mxu0 0
      %1734 = vmatpush1.bf16.msra.mxu0 0
      %1735 = vmatprep.subr.bf16.mxu0 0
      %1736 = vmatpush1.bf16.msra.mxu0 0
      %1737 = vmatprep.subr.bf16.mxu0 0
      %1738 = vmatpush1.bf16.msra.mxu0 0
      %1739 = vmatprep.subr.bf16.mxu0 0
      %1740 = vmatpush1.bf16.msra.mxu0 0
      %1741 = vmatprep.subr.bf16.mxu0 0
      %1742 = vmatpush1.bf16.msra.mxu0 0
      %1743 = vmatprep.subr.bf16.mxu0 0
      %1744 = vmatpush1.bf16.msra.mxu0 0
      %1745 = vmatprep.subr.bf16.mxu0 0
      %1746 = vmatpush1.bf16.msra.mxu0 0
      %1747 = vmatprep.subr.bf16.mxu0 0
      %1748 = vmatpush1.bf16.msra.mxu0 0
      %1749 = vmatprep.subr.bf16.mxu0 0
      %1750 = vmatpush1.bf16.msra.mxu0 0
      %1751 = vmatprep.subr.bf16.mxu0 0
      %1752 = vmatpush1.bf16.msra.mxu0 0
      %1753 = vmatprep.mubr.bf16.mxu0 0
      %1754 = vmatmul.mubr.bf16.gmra.mrb[0].mxu0 %v1716
      %v1755 = vpop.f32.mrb[0].mxu0
      %v1756 = vadd.f32 %v1687, %v1755
      %v1757 = vpop.f32.mrb[0].mxu0
      %v1758 = vadd.f32 %v1687, %v1757
      %v1759 = vpop.f32.mrb[0].mxu0
      %v1760 = vadd.f32 %v1692, %v1759
      %v1761 = vpop.f32.mrb[0].mxu0
      %v1762 = vadd.f32 %v1692, %v1761
      %1763 = vmatprep.mubr.bf16.mxu0 0
      %1764 = vmatmul.mubr.bf16.gmra.mrb[0].mxu0 %v1719
      %v1765 = vpop.f32.mrb[0].mxu0
      %v1766 = vadd.f32 %v1697, %v1765
      %v1767 = vpop.f32.mrb[0].mxu0
      %v1768 = vadd.f32 %v1697, %v1767
      %v1769 = vpop.f32.mrb[0].mxu0
      %v1770 = vadd.f32 %v1702, %v1769
      %v1771 = vpop.f32.mrb[0].mxu0
      %v1772 = vadd.f32 %v1702, %v1771
      %1773 = vdwg.mxu0
      %v1774 = vsub.f32 0.0, %v1756
      %v1775 = vsub.f32 0.0, %v1758
      %v1776 = vsub.f32 0.0, %v1760
      %v1777 = vsub.f32 0.0, %v1762
      %v1778 = vsub.f32 0.0, %v1766
      %v1779 = vsub.f32 0.0, %v1768
      %v1780 = vsub.f32 0.0, %v1770
      %v1781 = vsub.f32 0.0, %v1772
      %v1782 = vmul.f32 %v1774, 1.442695
      %v1783 = vpow.pop %v1782
      %v1784 = vmul.f32 %v1775, 1.442695
      %v1785 = vpow.pop %v1784
      %v1786 = vmul.f32 %v1776, 1.442695
      %v1787 = vpow.pop %v1786
      %v1788 = vmul.f32 %v1777, 1.442695
      %v1789 = vpow.pop %v1788
      %v1790 = vmul.f32 %v1778, 1.442695
      %v1791 = vpow.pop %v1790
      %v1792 = vmul.f32 %v1779, 1.442695
      %v1793 = vpow.pop %v1792
      %v1794 = vmul.f32 %v1780, 1.442695
      %v1795 = vpow.pop %v1794
      %v1796 = vmul.f32 %v1781, 1.442695
      %v1797 = vpow.pop %v1796
      %v1798 = vadd.f32 %v1783, 1.0
      %v1799 = vadd.f32 %v1785, 1.0
      %v1800 = vadd.f32 %v1787, 1.0
      %v1801 = vadd.f32 %v1789, 1.0
      %v1802 = vadd.f32 %v1791, 1.0
      %v1803 = vadd.f32 %v1793, 1.0
      %v1804 = vadd.f32 %v1795, 1.0
      %v1805 = vadd.f32 %v1797, 1.0
      %v1806 = vrcp.pop %v1798
      %v1807 = vrcp.pop %v1799
      %v1808 = vrcp.pop %v1800
      %v1809 = vrcp.pop %v1801
      %v1810 = vrcp.pop %v1802
      %v1811 = vrcp.pop %v1803
      %v1812 = vrcp.pop %v1804
      %v1813 = vrcp.pop %v1805
      %v1814 = vmul.f32 %v1756, %v1806
      %v1815 = vmul.f32 %v1758, %v1807
      %v1816 = vmul.f32 %v1760, %v1808
      %v1817 = vmul.f32 %v1762, %v1809
      %v1818 = vmul.f32 %v1766, %v1810
      %v1819 = vmul.f32 %v1768, %v1811
      %v1820 = vmul.f32 %v1770, %v1812
      %v1821 = vmul.f32 %v1772, %v1813
      %v1822 = vadd.f32 %v442, %v1814
      %v1823 = vadd.f32 %v443, %v1815
      %v1824 = vadd.f32 %v444, %v1816
      %v1825 = vadd.f32 %v445, %v1817
      %v1826 = vadd.f32 %v446, %v1818
      %v1827 = vadd.f32 %v447, %v1819
      %v1828 = vadd.f32 %v448, %v1820
      %v1829 = vadd.f32 %v449, %v1821
      %1830 = vst [vmem:[%s440] sm:$0xff] %v1822
      %1831 = vst [vmem:[%s440 + $0x8] sm:$0xff] %v1823
      %1832 = vst [vmem:[%s440 + $0x10] sm:$0xff] %v1824
      %1833 = vst [vmem:[%s440 + $0x18] sm:$0xff] %v1825
      %1834 = vst [vmem:[%s440 + $0x20] sm:$0xff] %v1826
      %1835 = vst [vmem:[%s440 + $0x28] sm:$0xff] %v1827
      %1836 = vst [vmem:[%s440 + $0x30] sm:$0xff] %v1828
      %1837 = vst [vmem:[%s440 + $0x38] sm:$0xff] %v1829
      %p1838 = scmp.lt.s32.totalorder %s24, 1
      %s1839 = scalar_select %p1838, %s24, 1
      %s1840 = smul.addr %s1839, 8
      %s1841 = smul.addr %s1840, 8
      %s1842 = scalar_lea.vmem %s13, %s1841
      // Predicated region
      $region73: #{msfe_forward.1} parent=71 // pred_check
        %p1843 = pneg %p320
      $region74: #{msfe_forward.1} parent=71 // pred_check_branch
        %1845 = sbr.rel (%p1843) target = $region76
      $region75: #{msfe_forward.1} parent=71 // pred_region
        _
      $region76: #{msfe_forward.1} parent=71 // pred_fallthru
        _
    $region72: #{msfe_forward.1} parent=5 // pred_fallthru
      _
    %p1846 = scmp.le.s32.totalorder 2, %s19
    // Predicated region
    $region77: #{msfe_forward.1} parent=5 // pred_check
      %p1847 = pneg %p1846
    $region78: #{msfe_forward.1} parent=5 // pred_check_branch
      %1849 = sbr.rel (%p1847) target = $region80
    $region79: #{msfe_forward.1} parent=5 // pred_region
      %s1850 = ssub.s32 %s19, 2
      // Predicated region
      $region81: #{msfe_forward.1} parent=79 // pred_check
        %p1851 = pneg %p326
      $region82: #{msfe_forward.1} parent=79 // pred_check_branch
        %1853 = sbr.rel (%p1851) target = $region84
      $region83: #{msfe_forward.1} parent=79 // pred_region
        %p1854 = scmp.lt.s32.totalorder %s25, 1
        %s1855 = scalar_select %p1854, %s25, 1
        %s1856 = smul.addr %s1855, 8
        %s1857 = smul.addr %s1856, 8
        %s1858 = scalar_lea.vmem %s13, %s1857
      $region84: #{msfe_forward.1} parent=79 // pred_fallthru
        _
    $region80: #{msfe_forward.1} parent=5 // pred_fallthru
      _
  $region6: #{msfe_forward.1} parent=0 // loop_footer
    %s23 = sadd.s32 1, %s19
  $region7: #{msfe_forward.1} parent=0 // loop_footer_branch
    %18 = sbr.rel target = $region3
  $region8: #{msfe_forward.1} parent=0 // loop_exit
    _

</llo_original>
